<compile_context>
chip_gen: v7x
topology: tpu7x:2x2x1
jax: 0.10.0
libtpu: 0.0.40
codegen_flags: <defaults>
</compile_context>

<pallas_src>
import jax
import jax.numpy as jnp
from jax import lax
from jax.experimental import pallas as pl
from jax.experimental.pallas import tpu as pltpu


def _round_up(x, m):
    return ((x + m - 1) // m) * m


# ----------------------------------------------------------------------------
# Kernel 1: msg = Linear(2D,D)([H @ item_emb, (H @ item_emb) * user_emb])
#   grid = (E_tiles, N_tiles) ; trailing axis reduces over nodes (K of first matmul)
# ----------------------------------------------------------------------------
def _msg_kernel(h_ref, node_ref, edge_ref, w_ref, b_ref, msg_ref, acc_ref):
    ki = pl.program_id(1)

    @pl.when(ki == 0)
    def _init():
        acc_ref[...] = jnp.zeros_like(acc_ref)

    # Partial node_msg: (te, tn) @ (tn, D).  bf16->f32 cast of H is exact for 0/1.
    acc_ref[...] += jnp.dot(h_ref[...].astype(jnp.float32), node_ref[...],
                            preferred_element_type=jnp.float32)

    @pl.when(ki == pl.num_programs(1) - 1)
    def _finish():
        node_msg = acc_ref[...]
        elem = node_msg * edge_ref[...]
        # Single MXU push with K = 2D (Linear(2D, D) applied to the concat).
        cat = jnp.concatenate([node_msg, elem], axis=1)
        msg_ref[...] = (jnp.dot(cat, w_ref[...],
                                preferred_element_type=jnp.float32)
                        + b_ref[...])


# ----------------------------------------------------------------------------
# Kernel 2: norm_emb = H^T @ msg  (no materialized transpose of H)
#   grid = (N_tiles, E_tiles) ; trailing axis reduces over edges
# ----------------------------------------------------------------------------
def _norm_kernel(h_ref, msg_ref, norm_ref, acc_ref):
    ei = pl.program_id(1)

    @pl.when(ei == 0)
    def _init():
        acc_ref[...] = jnp.zeros_like(acc_ref)

    # Contract dim 0 of the row-major H tile against dim 0 of the msg tile.
    acc_ref[...] += lax.dot_general(
        h_ref[...].astype(jnp.float32), msg_ref[...],
        dimension_numbers=(((0,), (0,)), ((), ())),
        preferred_element_type=jnp.float32)

    @pl.when(ei == pl.num_programs(1) - 1)
    def _finish():
        norm_ref[...] = acc_ref[...]


# ----------------------------------------------------------------------------
# Wrapper: HGBCN.forward(user_emb, item_emb, hyper_graph) with torch nn.Linear params
# ----------------------------------------------------------------------------
def hgbcn_forward(user_emb, item_emb, hyper_graph, weight, bias,
                  *, block_e=256, block_n=512, h_dtype=jnp.bfloat16):
    """weight: [D, 2D] (torch layout), bias: [D].  Returns (norm_emb [N,D], msg [E,D])."""
    E, N = hyper_graph.shape
    D = item_emb.shape[1]
    assert user_emb.shape == (E, D)
    assert weight.shape == (D, 2 * D) and bias.shape == (D,)
    assert block_e % 8 == 0 and block_n % 128 == 0

    w = weight.T.astype(jnp.float32)            # [2D, D]
    b = bias.astype(jnp.float32)[None, :]       # [1, D]

    te = min(block_e, _round_up(E, 8))
    tn = min(block_n, _round_up(N, 128))
    Ep = _round_up(E, te)
    Np = _round_up(N, tn)

    # Zero padding is exact: padded H rows/cols are 0 so they contribute nothing to
    # either matmul; padded output rows are sliced off below.
    # bf16 storage of H is exact for 0/1 incidence; pass h_dtype=jnp.float32 otherwise.
    Hp = jnp.zeros((Ep, Np), h_dtype).at[:E, :N].set(hyper_graph.astype(h_dtype))
    node_p = jnp.zeros((Np, D), jnp.float32).at[:N].set(item_emb.astype(jnp.float32))
    edge_p = jnp.zeros((Ep, D), jnp.float32).at[:E].set(user_emb.astype(jnp.float32))

    msg_p = pl.pallas_call(
        _msg_kernel,
        grid=(Ep // te, Np // tn),
        in_specs=[
            pl.BlockSpec((te, tn), lambda ei, ki: (ei, ki)),    # H tile
            pl.BlockSpec((tn, D), lambda ei, ki: (ki, 0)),      # item_emb tile
            pl.BlockSpec((te, D), lambda ei, ki: (ei, 0)),      # user_emb tile (resident per ei)
            pl.BlockSpec((2 * D, D), lambda ei, ki: (0, 0)),    # weight (resident)
            pl.BlockSpec((1, D), lambda ei, ki: (0, 0)),        # bias (resident)
        ],
        out_specs=pl.BlockSpec((te, D), lambda ei, ki: (ei, 0)),
        out_shape=jax.ShapeDtypeStruct((Ep, D), jnp.float32),
        scratch_shapes=[pltpu.VMEM((te, D), jnp.float32)],
        compiler_params=pltpu.CompilerParams(
            dimension_semantics=("parallel", "arbitrary")),
    )(Hp, node_p, edge_p, w, b)

    norm_p = pl.pallas_call(
        _norm_kernel,
        grid=(Np // tn, Ep // te),
        in_specs=[
            pl.BlockSpec((te, tn), lambda ni, ei: (ei, ni)),    # H tile (row-major, no H.T copy)
            pl.BlockSpec((te, D), lambda ni, ei: (ei, 0)),      # msg tile
        ],
        out_specs=pl.BlockSpec((tn, D), lambda ni, ei: (ni, 0)),
        out_shape=jax.ShapeDtypeStruct((Np, D), jnp.float32),
        scratch_shapes=[pltpu.VMEM((tn, D), jnp.float32)],
        compiler_params=pltpu.CompilerParams(
            dimension_semantics=("parallel", "arbitrary")),
    )(Hp, msg_p)

    return norm_p[:N], msg_p[:E]


# ----------------------------------------------------------------------------
# Pure-JAX reference (mirrors the PyTorch forward exactly)
# ----------------------------------------------------------------------------
def _reference(user_emb, item_emb, hyper_graph, weight, bias):
    node_msg = hyper_graph @ item_emb
    elem = node_msg * user_emb
    msg = jnp.concatenate([node_msg, elem], axis=1) @ weight.T + bias
    norm = hyper_graph.T @ msg
    return norm, msg


# ----------------------------------------------------------------------------
if __name__ == "__main__":
    # edges (user/group side), nodes (item side), emb dim (lane-dense 128)
    E, N, D = 200, 384, 128

    key = jax.random.PRNGKey(0)
    k_h, k_u, k_i, k_w, k_b = jax.random.split(key, 5)

    hyper_graph = (jax.random.uniform(k_h, (E, N)) < 0.15).astype(jnp.float32)  # 0/1 incidence
    user_emb = jax.random.normal(k_u, (E, D), jnp.float32) * 0.1
    item_emb = jax.random.normal(k_i, (N, D), jnp.float32) * 0.1
    bound = (6.0 / (3.0 * D)) ** 0.5
    weight = jax.random.uniform(k_w, (D, 2 * D), jnp.float32, -bound, bound)
    bias = jax.random.uniform(k_b, (D,), jnp.float32, -bound, bound)

    # Small blocks in the demo so multiple tiles + the K accumulation path are exercised;
    # at real sizes raise block_e/block_n (per-generation, keeping within VMEM on v7x).
    run = jax.jit(lambda u, i, h, w, b: hgbcn_forward(u, i, h, w, b,
                                                      block_e=64, block_n=128))
    norm_emb, msg = jax.block_until_ready(run(user_emb, item_emb, hyper_graph,
                                              weight, bias))

    norm_ref, msg_ref = _reference(user_emb, item_emb, hyper_graph, weight, bias)

    assert norm_emb.shape == (N, D) and msg.shape == (E, D)
    assert bool(jnp.all(jnp.isfinite(norm_emb))) and bool(jnp.all(jnp.isfinite(msg)))
    assert bool(jnp.allclose(msg, msg_ref, atol=1e-3, rtol=1e-3))
    assert bool(jnp.allclose(norm_emb, norm_ref, atol=1e-3, rtol=1e-3))

    print("KERNEL_OK")
</pallas_src>

<mosaic_0001>
module attributes {stable_mosaic.version = 11 : i64} {
  func.func @_norm_kernel(%arg0: i32, %arg1: i32, %arg2: memref<64x128xbf16, #tpu.memory_space<vmem>>, %arg3: memref<64x128xf32, #tpu.memory_space<vmem>>, %arg4: memref<128x128xf32, #tpu.memory_space<vmem>>, %arg5: memref<128x128xf32, #tpu.memory_space<vmem>>) attributes {dimension_semantics = [#tpu.dimension_semantics<parallel>, #tpu.dimension_semantics<arbitrary>], iteration_bounds = array<i64: 3, 4>, scalar_prefetch = 0 : i64, scratch_operands = 1 : i64, tpu.core_type = #tpu.core_type<tc>, window_params = [{transform_indices = @transform_0, window_bounds = array<i64: 64, 128>}, {transform_indices = @transform_1, window_bounds = array<i64: 64, 128>}, {transform_indices = @transform_2, window_bounds = array<i64: 128, 128>}]} {
    %c0_i32 = arith.constant 0 : i32
    %0 = arith.cmpi eq, %arg1, %c0_i32 : i32
    %1 = arith.extui %0 : i1 to i32
    %c0_i32_0 = arith.constant 0 : i32
    %2 = arith.cmpi ne, %1, %c0_i32_0 : i32
    scf.if %2 {
      %cst_9 = arith.constant 0.000000e+00 : f32
      %13 = vector.broadcast %cst_9 : f32 to vector<128x128xf32>
      %c0_10 = arith.constant 0 : index
      %c0_11 = arith.constant 0 : index
      %14 = vector.load %arg5[%c0_10, %c0_11] : memref<128x128xf32, #tpu.memory_space<vmem>>, vector<128x128xf32>
      tpu.vector_store %arg5[%c0_10, %c0_11], %13 {strides = array<i32>} : memref<128x128xf32, #tpu.memory_space<vmem>>, vector<128x128xf32>,
    } else {
    }
    %c0 = arith.constant 0 : index
    %c0_1 = arith.constant 0 : index
    %3 = vector.load %arg5[%c0, %c0_1] : memref<128x128xf32, #tpu.memory_space<vmem>>, vector<128x128xf32>
    %c0_2 = arith.constant 0 : index
    %c0_3 = arith.constant 0 : index
    %4 = vector.load %arg2[%c0_2, %c0_3] : memref<64x128xbf16, #tpu.memory_space<vmem>>, vector<64x128xbf16>
    %5 = arith.extf %4 : vector<64x128xbf16> to vector<64x128xf32>
    %c0_4 = arith.constant 0 : index
    %c0_5 = arith.constant 0 : index
    %6 = vector.load %arg3[%c0_4, %c0_5] : memref<64x128xf32, #tpu.memory_space<vmem>>, vector<64x128xf32>
    %cst = arith.constant dense<0.000000e+00> : vector<128x128xf32>
    %7 = tpu.matmul %5, %6, %cst {dimension_numbers = #tpu.dot_dimension_numbers<[0], [0], [1], [1], [0, 1, 1, 1], [], []>} : vector<64x128xf32>, vector<64x128xf32>, vector<128x128xf32> -> vector<128x128xf32>
    %8 = arith.addf %3, %7 : vector<128x128xf32>
    %c0_6 = arith.constant 0 : index
    %c0_7 = arith.constant 0 : index
    %9 = vector.load %arg5[%c0_6, %c0_7] : memref<128x128xf32, #tpu.memory_space<vmem>>, vector<128x128xf32>
    tpu.vector_store %arg5[%c0_6, %c0_7], %8 {strides = array<i32>} : memref<128x128xf32, #tpu.memory_space<vmem>>, vector<128x128xf32>,
    %c3_i32 = arith.constant 3 : i32
    %10 = arith.cmpi eq, %arg1, %c3_i32 : i32
    %11 = arith.extui %10 : i1 to i32
    %c0_i32_8 = arith.constant 0 : i32
    %12 = arith.cmpi ne, %11, %c0_i32_8 : i32
    scf.if %12 {
      %c0_9 = arith.constant 0 : index
      %c0_10 = arith.constant 0 : index
      %13 = vector.load %arg5[%c0_9, %c0_10] : memref<128x128xf32, #tpu.memory_space<vmem>>, vector<128x128xf32>
      %c0_11 = arith.constant 0 : index
      %c0_12 = arith.constant 0 : index
      %14 = vector.load %arg4[%c0_11, %c0_12] : memref<128x128xf32, #tpu.memory_space<vmem>>, vector<128x128xf32>
      tpu.vector_store %arg4[%c0_11, %c0_12], %13 {strides = array<i32>} : memref<128x128xf32, #tpu.memory_space<vmem>>, vector<128x128xf32>,
    } else {
    }
    return
  }
  func.func @transform_0(%arg0: i32, %arg1: i32) -> (i32, i32) {
    %c0_i32 = arith.constant 0 : i32
    return %arg1, %arg0 : i32, i32
  }
  func.func @transform_1(%arg0: i32, %arg1: i32) -> (i32, i32) {
    %c0_i32 = arith.constant 0 : i32
    %c0_i32_0 = arith.constant 0 : i32
    return %arg1, %c0_i32 : i32, i32
  }
  func.func @transform_2(%arg0: i32, %arg1: i32) -> (i32, i32) {
    %c0_i32 = arith.constant 0 : i32
    %c0_i32_0 = arith.constant 0 : i32
    return %arg0, %c0_i32 : i32, i32
  }
}

module attributes {stable_mosaic.version = 11 : i64} {
  func.func @_msg_kernel(%arg0: i32, %arg1: i32, %arg2: memref<64x128xbf16, #tpu.memory_space<vmem>>, %arg3: memref<128x128xf32, #tpu.memory_space<vmem>>, %arg4: memref<64x128xf32, #tpu.memory_space<vmem>>, %arg5: memref<256x128xf32, #tpu.memory_space<vmem>>, %arg6: memref<1x128xf32, #tpu.memory_space<vmem>>, %arg7: memref<64x128xf32, #tpu.memory_space<vmem>>, %arg8: memref<64x128xf32, #tpu.memory_space<vmem>>) attributes {dimension_semantics = [#tpu.dimension_semantics<parallel>, #tpu.dimension_semantics<arbitrary>], iteration_bounds = array<i64: 4, 3>, scalar_prefetch = 0 : i64, scratch_operands = 1 : i64, tpu.core_type = #tpu.core_type<tc>, window_params = [{transform_indices = @transform_0, window_bounds = array<i64: 64, 128>}, {transform_indices = @transform_1, window_bounds = array<i64: 128, 128>}, {transform_indices = @transform_2, window_bounds = array<i64: 64, 128>}, {pipeline_mode = #tpu.pipeline_mode<synchronous>, transform_indices = @transform_3, window_bounds = array<i64: 256, 128>}, {pipeline_mode = #tpu.pipeline_mode<synchronous>, transform_indices = @transform_4, window_bounds = array<i64: 1, 128>}, {transform_indices = @transform_5, window_bounds = array<i64: 64, 128>}]} {
    %c0_i32 = arith.constant 0 : i32
    %0 = arith.cmpi eq, %arg1, %c0_i32 : i32
    %1 = arith.extui %0 : i1 to i32
    %c0_i32_0 = arith.constant 0 : i32
    %2 = arith.cmpi ne, %1, %c0_i32_0 : i32
    scf.if %2 {
      %cst_9 = arith.constant 0.000000e+00 : f32
      %13 = vector.broadcast %cst_9 : f32 to vector<64x128xf32>
      %c0_10 = arith.constant 0 : index
      %c0_11 = arith.constant 0 : index
      %14 = vector.load %arg8[%c0_10, %c0_11] : memref<64x128xf32, #tpu.memory_space<vmem>>, vector<64x128xf32>
      tpu.vector_store %arg8[%c0_10, %c0_11], %13 {strides = array<i32>} : memref<64x128xf32, #tpu.memory_space<vmem>>, vector<64x128xf32>,
    } else {
    }
    %c0 = arith.constant 0 : index
    %c0_1 = arith.constant 0 : index
    %3 = vector.load %arg8[%c0, %c0_1] : memref<64x128xf32, #tpu.memory_space<vmem>>, vector<64x128xf32>
    %c0_2 = arith.constant 0 : index
    %c0_3 = arith.constant 0 : index
    %4 = vector.load %arg2[%c0_2, %c0_3] : memref<64x128xbf16, #tpu.memory_space<vmem>>, vector<64x128xbf16>
    %5 = arith.extf %4 : vector<64x128xbf16> to vector<64x128xf32>
    %c0_4 = arith.constant 0 : index
    %c0_5 = arith.constant 0 : index
    %6 = vector.load %arg3[%c0_4, %c0_5] : memref<128x128xf32, #tpu.memory_space<vmem>>, vector<128x128xf32>
    %cst = arith.constant dense<0.000000e+00> : vector<64x128xf32>
    %7 = tpu.matmul %5, %6, %cst {dimension_numbers = #tpu.dot_dimension_numbers<[1], [0], [0], [1], [0, 0, 1, 1], [], []>} : vector<64x128xf32>, vector<128x128xf32>, vector<64x128xf32> -> vector<64x128xf32>
    %8 = arith.addf %3, %7 : vector<64x128xf32>
    %c0_6 = arith.constant 0 : index
    %c0_7 = arith.constant 0 : index
    %9 = vector.load %arg8[%c0_6, %c0_7] : memref<64x128xf32, #tpu.memory_space<vmem>>, vector<64x128xf32>
    tpu.vector_store %arg8[%c0_6, %c0_7], %8 {strides = array<i32>} : memref<64x128xf32, #tpu.memory_space<vmem>>, vector<64x128xf32>,
    %c2_i32 = arith.constant 2 : i32
    %10 = arith.cmpi eq, %arg1, %c2_i32 : i32
    %11 = arith.extui %10 : i1 to i32
    %c0_i32_8 = arith.constant 0 : i32
    %12 = arith.cmpi ne, %11, %c0_i32_8 : i32
    scf.if %12 {
      %c0_9 = arith.constant 0 : index
      %c0_10 = arith.constant 0 : index
      %13 = vector.load %arg8[%c0_9, %c0_10] : memref<64x128xf32, #tpu.memory_space<vmem>>, vector<64x128xf32>
      %c0_11 = arith.constant 0 : index
      %c0_12 = arith.constant 0 : index
      %14 = vector.load %arg4[%c0_11, %c0_12] : memref<64x128xf32, #tpu.memory_space<vmem>>, vector<64x128xf32>
      %15 = arith.mulf %13, %14 : vector<64x128xf32>
      %16 = tpu.concatenate %13, %15 in 1 : vector<64x128xf32>, vector<64x128xf32> -> vector<64x256xf32>
      %c0_13 = arith.constant 0 : index
      %c0_14 = arith.constant 0 : index
      %17 = vector.load %arg5[%c0_13, %c0_14] : memref<256x128xf32, #tpu.memory_space<vmem>>, vector<256x128xf32>
      %cst_15 = arith.constant dense<0.000000e+00> : vector<64x128xf32>
      %18 = tpu.matmul %16, %17, %cst_15 {dimension_numbers = #tpu.dot_dimension_numbers<[1], [0], [0], [1], [0, 0, 1, 1], [], []>} : vector<64x256xf32>, vector<256x128xf32>, vector<64x128xf32> -> vector<64x128xf32>
      %c0_16 = arith.constant 0 : index
      %c0_17 = arith.constant 0 : index
      %19 = vector.load %arg6[%c0_16, %c0_17] : memref<1x128xf32, #tpu.memory_space<vmem>>, vector<1x128xf32>
      %20 = vector.broadcast %19 : vector<1x128xf32> to vector<64x128xf32>
      %21 = arith.addf %18, %20 : vector<64x128xf32>
      %c0_18 = arith.constant 0 : index
      %c0_19 = arith.constant 0 : index
      %22 = vector.load %arg7[%c0_18, %c0_19] : memref<64x128xf32, #tpu.memory_space<vmem>>, vector<64x128xf32>
      tpu.vector_store %arg7[%c0_18, %c0_19], %21 {strides = array<i32>} : memref<64x128xf32, #tpu.memory_space<vmem>>, vector<64x128xf32>,
    } else {
    }
    return
  }
  func.func @transform_0(%arg0: i32, %arg1: i32) -> (i32, i32) {
    %c0_i32 = arith.constant 0 : i32
    return %arg0, %arg1 : i32, i32
  }
  func.func @transform_1(%arg0: i32, %arg1: i32) -> (i32, i32) {
    %c0_i32 = arith.constant 0 : i32
    %c0_i32_0 = arith.constant 0 : i32
    return %arg1, %c0_i32 : i32, i32
  }
  func.func @transform_2(%arg0: i32, %arg1: i32) -> (i32, i32) {
    %c0_i32 = arith.constant 0 : i32
    %c0_i32_0 = arith.constant 0 : i32
    return %arg0, %c0_i32 : i32, i32
  }
  func.func @transform_3(%arg0: i32, %arg1: i32) -> (i32, i32) {
    %c0_i32 = arith.constant 0 : i32
    %c0_i32_0 = arith.constant 0 : i32
    %c0_i32_1 = arith.constant 0 : i32
    return %c0_i32, %c0_i32_0 : i32, i32
  }
  func.func @transform_4(%arg0: i32, %arg1: i32) -> (i32, i32) {
    %c0_i32 = arith.constant 0 : i32
    %c0_i32_0 = arith.constant 0 : i32
    %c0_i32_1 = arith.constant 0 : i32
    return %c0_i32, %c0_i32_0 : i32, i32
  }
  func.func @transform_5(%arg0: i32, %arg1: i32) -> (i32, i32) {
    %c0_i32 = arith.constant 0 : i32
    %c0_i32_0 = arith.constant 0 : i32
    return %arg0, %c0_i32 : i32, i32
  }
}

</mosaic_0001>

<llo_original>
// kernel: _lambda_.3
$region0: #{_lambda_.3}
  #allocation0 [shape = 'u32[]', space=smem, size = 0x4, offset = 0x4, fixed_abs, tag = 'smem constant byte address 0x4 - core index']
  #allocation1 [shape = 'u32[144,128]{1,0:T(1,128)}', space=vmem, size = 0x12000, scoped, tag = 'internal scratch']
  #allocation2 [shape = 'f32[128,128]{1,0:T(8,128)}', space=vmem, size = 0x10000, scoped, tag = 'scratch operand']
  %s0 = inlined_call_operand.vmem [shape: bf16[256,384], index: 0, kind: input, shape index: {}]
  %s1 = inlined_call_operand.vmem [shape: f32[256,128], index: 1, kind: input, shape index: {}]
  %s2 = inlined_call_operand.hbm [shape: f32[384,128], index: 2, kind: output, shape index: {}]
  %s3 = sld [smem:[#allocation0]]
  $region90: #{_lambda_.3} parent=0
    _
  %s5 = ssub.s32 1, %s3
  %s6 = scalar_select 0, %s5, %s3
  $region1: #{_lambda_.3} parent=0
    #allocation3 [shape = 'u8[32768]{0}', space=vmem, size = 0x8000, scoped, tag = 'input window, operand 0']
    #allocation4 [shape = 'u8[131072]{0}', space=vmem, size = 0x20000, scoped, tag = 'output window, operand 0']
    #allocation5 [shape = 's32[2]{0}', space=sflag, size = 0x8, scoped, tag = 'scoped memory for _lambda_.3']
    %7 = vsyncpa [#allocation5], 0
    %s8 = scalar_lea.sflag [#allocation5], 1
    %9 = vsyncpa %s8, 0
    loop: start=0, step=1, limit=14
    $region2: #{_lambda_.3} parent=1 // loop_pre_header
      _
    $region3: #{_lambda_.3} parent=1 // loop_header
      %s11 = sphi 0, %s15
      %p12 = scmp.ge.s32.totalorder %s11, 14
      %s18 = sphi 0, %s30
      %s19 = sphi 0, %s26
      %s20 = sphi 0, %s18
      %s21 = sphi 0, %s19
      %s22 = sphi 0, %s20
      %s23 = sphi 0, %s21
      %s35 = sphi 0, %s37
      %s38 = sphi 0, %s35
      %s39 = sphi 0, %s38
      %s55 = sphi 0, %s39
      %s61 = sphi 0, %s63
      %s64 = sphi 0, %s61
      %s65 = sphi 0, %s64
      %s81 = sphi 0, %s65
      %s87 = sphi 0, %s89
      %s90 = sphi 0, %s87
      %s91 = sphi 0, %s90
      %s107 = sphi 0, %s91
    $region4: #{_lambda_.3} parent=1 // loop_header_branch
      %14 = sbr.rel (%p12) target = $region8
    $region5: #{_lambda_.3} parent=1 // loop_body
      %s16 = ssub.s32 %s11, 1
      %s17 = ssub.s32 %s11, 2
      %s24 = sadd.s32 1, %s19
      %p25 = scmp.ge.s32.totalorder %s24, 4
      %s26 = scalar_select %p25, 0, %s24
      %s27 = sadd.s32 1, %s18
      %s28 = scalar_select %p25, %s27, %s18
      %p29 = scmp.ge.s32.totalorder %s28, 3
      %s30 = scalar_select %p29, 0, %s28
      %s31 = ssub.s32 %s19, %s26
      %s32 = ssub.s32 %s18, %s30
      %s33 = sor.u32 %s31, %s32
      %p34 = scmp.eq.s32.totalorder %s33, 0
      %s36 = sadd.s32 %s35, 1
      %s37 = scalar_select %p34, %s35, %s36
      %p40 = pneg %p34
      %p41 = scmp.eq.s32.totalorder %s11, 11
      %p42 = por %p40, %p41
      %p43 = scmp.ne.s32.totalorder %s35, %s38
      %p44 = scmp.eq.s32.totalorder %s11, 0
      %p45 = por %p43, %p44
      %p46 = scmp.ne.s32.totalorder %s35, %s38
      %p47 = scmp.eq.s32.totalorder %s16, 11
      %p48 = por %p46, %p47
      %p49 = scmp.ne.s32.totalorder %s38, %s39
      %p50 = scmp.eq.s32.totalorder %s16, 0
      %p51 = por %p49, %p50
      %p52 = scmp.ne.s32.totalorder %s38, %s39
      %p53 = scmp.eq.s32.totalorder %s17, 11
      %p54 = por %p52, %p53
      %p56 = scmp.ne.s32.totalorder %s39, %s55
      %p57 = scmp.eq.s32.totalorder %s17, 0
      %p58 = por %p56, %p57
      %s59 = ssub.s32 %s19, %s26
      %p60 = scmp.eq.s32.totalorder %s59, 0
      %s62 = sadd.s32 %s61, 1
      %s63 = scalar_select %p60, %s61, %s62
      %p66 = pneg %p60
      %p67 = scmp.eq.s32.totalorder %s11, 11
      %p68 = por %p66, %p67
      %p69 = scmp.ne.s32.totalorder %s61, %s64
      %p70 = scmp.eq.s32.totalorder %s11, 0
      %p71 = por %p69, %p70
      %p72 = scmp.ne.s32.totalorder %s61, %s64
      %p73 = scmp.eq.s32.totalorder %s16, 11
      %p74 = por %p72, %p73
      %p75 = scmp.ne.s32.totalorder %s64, %s65
      %p76 = scmp.eq.s32.totalorder %s16, 0
      %p77 = por %p75, %p76
      %p78 = scmp.ne.s32.totalorder %s64, %s65
      %p79 = scmp.eq.s32.totalorder %s17, 11
      %p80 = por %p78, %p79
      %p82 = scmp.ne.s32.totalorder %s65, %s81
      %p83 = scmp.eq.s32.totalorder %s17, 0
      %p84 = por %p82, %p83
      %s85 = ssub.s32 %s18, %s30
      %p86 = scmp.eq.s32.totalorder %s85, 0
      %s88 = sadd.s32 %s87, 1
      %s89 = scalar_select %p86, %s87, %s88
      %p92 = pneg %p86
      %p93 = scmp.eq.s32.totalorder %s11, 11
      %p94 = por %p92, %p93
      %p95 = scmp.ne.s32.totalorder %s87, %s90
      %p96 = scmp.eq.s32.totalorder %s11, 0
      %p97 = por %p95, %p96
      %p98 = scmp.ne.s32.totalorder %s87, %s90
      %p99 = scmp.eq.s32.totalorder %s16, 11
      %p100 = por %p98, %p99
      %p101 = scmp.ne.s32.totalorder %s90, %s91
      %p102 = scmp.eq.s32.totalorder %s16, 0
      %p103 = por %p101, %p102
      %p104 = scmp.ne.s32.totalorder %s90, %s91
      %p105 = scmp.eq.s32.totalorder %s17, 11
      %p106 = por %p104, %p105
      %p108 = scmp.ne.s32.totalorder %s91, %s107
      %p109 = scmp.eq.s32.totalorder %s17, 0
      %p110 = por %p108, %p109
      %p111 = scmp.le.s32.totalorder 1, %s11
      %p112 = scmp.lt.s32.totalorder %s11, 13
      %p113 = pnand %p111, %p112
      %p114 = pneg %p113
      // Predicated region
      $region9: #{_lambda_.3} parent=5 // pred_check
        _
      $region10: #{_lambda_.3} parent=5 // pred_check_branch
        %116 = sbr.rel (%p113) target = $region12
      $region11: #{_lambda_.3} parent=5 // pred_region
        %s117 = ssub.s32 %s11, 1
      $region12: #{_lambda_.3} parent=5 // pred_fallthru
        _
      %p118 = scmp.lt.s32.totalorder %s11, 12
      // Predicated region
      $region13: #{_lambda_.3} parent=5 // pred_check
        %p119 = pneg %p118
      $region14: #{_lambda_.3} parent=5 // pred_check_branch
        %121 = sbr.rel (%p119) target = $region16
      $region15: #{_lambda_.3} parent=5 // pred_region
        // Predicated region
        $region17: #{_lambda_.3} parent=15 // pred_check
          %p122 = pneg %p45
        $region18: #{_lambda_.3} parent=15 // pred_check_branch
          %124 = sbr.rel (%p122) target = $region20
        $region19: #{_lambda_.3} parent=15 // pred_region
          %s125 = sand.u32 %s35, 1
          %s126 = sand.u32 %s35, 1
          %s127 = smul.addr %s126, 32
          %s128 = scalar_lea.vmem [#allocation3], %s127
          %s129 = smul.u32 8, %s19
          %s130 = smul.addr %s129, 3
          %s131 = sadd.s32 %s18, %s130
          %s132 = smul.addr %s131, 4
          %s133 = scalar_lea.vmem %s0, %s132
          // Predicated region
          $region21: #{_lambda_.3} parent=19 // pred_check
            _
          $region22: #{_lambda_.3} parent=19 // pred_check_branch
            %135 = sbr.rel (0) target = $region24
          $region23: #{_lambda_.3} parent=19 // pred_region
            // Predicated region
            $region25: #{_lambda_.3} parent=23 // pred_check
              _
            $region26: #{_lambda_.3} parent=23 // pred_check_branch
              %137 = sbr.rel target = $region28
            $region27: #{_lambda_.3} parent=23 // pred_region
              // Predicated region
              $region40: #{_lambda_.3} parent=27 // pred_check
                _
              $region41: #{_lambda_.3} parent=27 // pred_check_branch
                %166 = sbr.rel (0) target = $region43
              $region42: #{_lambda_.3} parent=27 // pred_region
                loop: start=0, step=1, limit=1
                $region44: #{_lambda_.3} parent=42 // loop_pre_header
                  _
                $region45: #{_lambda_.3} parent=42 // loop_header
                  %s168 = sphi 0, %s172
                  %p169 = scmp.ge.s32.totalorder %s168, 1
                  %s173 = sphi %s133, %s133
                  %s174 = sphi %s128, %s128
                $region46: #{_lambda_.3} parent=42 // loop_header_branch
                  %171 = sbr.rel (%p169) target = $region50
                $region47: #{_lambda_.3} parent=42 // loop_body
                  _
                $region48: #{_lambda_.3} parent=42 // loop_footer
                  %s172 = sadd.s32 1, %s168
                $region49: #{_lambda_.3} parent=42 // loop_footer_branch
                  %167 = sbr.rel target = $region45
                $region50: #{_lambda_.3} parent=42 // loop_exit
                  _
                loop: start=0, step=1, limit=1
                $region51: #{_lambda_.3} parent=42 // loop_pre_header
                  _
                $region52: #{_lambda_.3} parent=42 // loop_header
                  %s177 = sphi 0, %s181
                  %p178 = scmp.ge.s32.totalorder %s177, 1
                  %s182 = sphi %s133, %s133
                  %s183 = sphi %s128, %s128
                $region53: #{_lambda_.3} parent=42 // loop_header_branch
                  %180 = sbr.rel (%p178) target = $region57
                $region54: #{_lambda_.3} parent=42 // loop_body
                  %v184 = vld [vmem:[%s182] sm:$0xf]
                  %185 = vst [vmem:[%s183] sm:$0xf] %v184
                  %v186 = vld [vmem:[%s182 + $0xc] sm:$0xf]
                  %187 = vst [vmem:[%s183 + $0x4] sm:$0xf] %v186
                  %v188 = vld [vmem:[%s182 + $0x18] sm:$0xf]
                  %189 = vst [vmem:[%s183 + $0x8] sm:$0xf] %v188
                  %v190 = vld [vmem:[%s182 + $0x24] sm:$0xf]
                  %191 = vst [vmem:[%s183 + $0xc] sm:$0xf] %v190
                  %v192 = vld [vmem:[%s182 + $0x30] sm:$0xf]
                  %193 = vst [vmem:[%s183 + $0x10] sm:$0xf] %v192
                  %v194 = vld [vmem:[%s182 + $0x3c] sm:$0xf]
                  %195 = vst [vmem:[%s183 + $0x14] sm:$0xf] %v194
                  %v196 = vld [vmem:[%s182 + $0x48] sm:$0xf]
                  %197 = vst [vmem:[%s183 + $0x18] sm:$0xf] %v196
                  %v198 = vld [vmem:[%s182 + $0x54] sm:$0xf]
                  %199 = vst [vmem:[%s183 + $0x1c] sm:$0xf] %v198
                $region55: #{_lambda_.3} parent=42 // loop_footer
                  %s181 = sadd.s32 1, %s177
                $region56: #{_lambda_.3} parent=42 // loop_footer_branch
                  %176 = sbr.rel target = $region52
                $region57: #{_lambda_.3} parent=42 // loop_exit
                  _
              $region43: #{_lambda_.3} parent=27 // pred_fallthru
                _
            $region28: #{_lambda_.3} parent=23 // pred_fallthru
              _
            // Predicated region
            $region29: #{_lambda_.3} parent=23 // pred_check
              _
            $region30: #{_lambda_.3} parent=23 // pred_check_branch
              %139 = sbr.rel (0) target = $region32
            $region31: #{_lambda_.3} parent=23 // pred_region
              loop: start=0, step=1, limit=1
              $region33: #{_lambda_.3} parent=31 // loop_pre_header
                _
              $region34: #{_lambda_.3} parent=31 // loop_header
                %s142 = sphi 0, %s146
                %p143 = scmp.ge.s32.totalorder %s142, 1
                %s147 = sphi %s133, %s133
                %s148 = sphi %s128, %s128
              $region35: #{_lambda_.3} parent=31 // loop_header_branch
                %145 = sbr.rel (%p143) target = $region39
              $region36: #{_lambda_.3} parent=31 // loop_body
                %v149 = vld [vmem:[%s147] sm:$0xf]
                %150 = vst [vmem:[%s148] sm:$0xf] %v149
                %v151 = vld [vmem:[%s147 + $0xc] sm:$0xf]
                %152 = vst [vmem:[%s148 + $0x4] sm:$0xf] %v151
                %v153 = vld [vmem:[%s147 + $0x18] sm:$0xf]
                %154 = vst [vmem:[%s148 + $0x8] sm:$0xf] %v153
                %v155 = vld [vmem:[%s147 + $0x24] sm:$0xf]
                %156 = vst [vmem:[%s148 + $0xc] sm:$0xf] %v155
                %v157 = vld [vmem:[%s147 + $0x30] sm:$0xf]
                %158 = vst [vmem:[%s148 + $0x10] sm:$0xf] %v157
                %v159 = vld [vmem:[%s147 + $0x3c] sm:$0xf]
                %160 = vst [vmem:[%s148 + $0x14] sm:$0xf] %v159
                %v161 = vld [vmem:[%s147 + $0x48] sm:$0xf]
                %162 = vst [vmem:[%s148 + $0x18] sm:$0xf] %v161
                %v163 = vld [vmem:[%s147 + $0x54] sm:$0xf]
                %164 = vst [vmem:[%s148 + $0x1c] sm:$0xf] %v163
              $region37: #{_lambda_.3} parent=31 // loop_footer
                %s146 = sadd.s32 1, %s142
              $region38: #{_lambda_.3} parent=31 // loop_footer_branch
                %141 = sbr.rel target = $region34
              $region39: #{_lambda_.3} parent=31 // loop_exit
                _
            $region32: #{_lambda_.3} parent=23 // pred_fallthru
              _
          $region24: #{_lambda_.3} parent=19 // pred_fallthru
            _
          %200 = vnop
        $region20: #{_lambda_.3} parent=15 // pred_fallthru
          _
        // Predicated region
        $region58: #{_lambda_.3} parent=15 // pred_check
          %p201 = pneg %p71
        $region59: #{_lambda_.3} parent=15 // pred_check_branch
          %203 = sbr.rel (%p201) target = $region61
        $region60: #{_lambda_.3} parent=15 // pred_region
          %s204 = smul.u32 8, %s19
          %p205 = scmp.lt.s32.totalorder %s204, 31
          %s206 = scalar_select %p205, %s204, 31
          %s207 = smul.addr %s206, 8
          %s208 = scalar_lea.vmem %s1, %s207
          %s209 = smul.u32 8, %s19
        $region61: #{_lambda_.3} parent=15 // pred_fallthru
          _
      $region16: #{_lambda_.3} parent=5 // pred_fallthru
        _
      %p210 = scmp.le.s32.totalorder 1, %s11
      %p211 = scmp.lt.s32.totalorder %s11, 13
      %p212 = pnand %p210, %p211
      %p213 = pneg %p212
      // Predicated region
      $region62: #{_lambda_.3} parent=5 // pred_check
        _
      $region63: #{_lambda_.3} parent=5 // pred_check_branch
        %215 = sbr.rel (%p212) target = $region65
      $region64: #{_lambda_.3} parent=5 // pred_region
        %s216 = ssub.s32 %s11, 1
        %s217 = sand.u32 %s38, 1
        %s218 = sand.u32 %s38, 1
        %s219 = smul.addr %s218, 32
        %s220 = scalar_lea.vmem [#allocation3], %s219
        // Predicated region
        $region66: #{_lambda_.3} parent=64 // pred_check
          %p221 = pneg %p51
        $region67: #{_lambda_.3} parent=64 // pred_check_branch
          %223 = sbr.rel (%p221) target = $region69
        $region68: #{_lambda_.3} parent=64 // pred_region
          _
        $region69: #{_lambda_.3} parent=64 // pred_fallthru
          _
        %s224 = sand.u32 %s38, 1
        %s225 = sand.u32 %s38, 1
        %s226 = smul.addr %s225, 32
        %s227 = scalar_lea.vmem [#allocation3], %s226
        %p228 = pneg %p51
        %p229 = pneg %p48
        %s230 = smul.u32 8, %s21
        %p231 = scmp.lt.s32.totalorder %s230, 31
        %s232 = scalar_select %p231, %s230, 31
        %s233 = smul.addr %s232, 8
        %s234 = scalar_lea.vmem %s1, %s233
        %p235 = pneg %p77
        %p236 = pneg %p74
        %p237 = pneg %p103
        %p238 = pneg %p100
        %s239 = sand.u32 %s90, 1
        %s240 = scalar_lea.sflag [#allocation5], %s239
        %s241 = sand.u32 %s90, 1
        %s242 = smul.addr %s241, 128
        %s243 = scalar_lea.vmem [#allocation4], %s242
        %s244 = smul.u32 8, %s21
        %s245 = smul.u32 8, %s21
        %p246 = scmp.lt.s32.totalorder %s245, 31
        %s247 = scalar_select %p246, %s245, 31
        %s248 = smul.addr %s247, 8
        %s249 = scalar_lea.vmem %s1, %s248
        %s250 = smul.u32 8, %s21
        %s251 = smul.u32 16, %s20
        %p252 = scmp.eq.s32.totalorder %s21, 0
        // Predicated region
        $region70: #{_lambda_.3} parent=64 // pred_check
          %p253 = pneg %p252
        $region71: #{_lambda_.3} parent=64 // pred_check_branch
          %255 = sbr.rel (%p253) target = $region73
        $region72: #{_lambda_.3} parent=64 // pred_region
          %256 = vst [vmem:[#allocation2] sm:$0xff] 0.0
          %257 = vst [vmem:[#allocation2 + $0x8] sm:$0xff] 0.0
          %258 = vst [vmem:[#allocation2 + $0x10] sm:$0xff] 0.0
          %259 = vst [vmem:[#allocation2 + $0x18] sm:$0xff] 0.0
          %260 = vst [vmem:[#allocation2 + $0x20] sm:$0xff] 0.0
          %261 = vst [vmem:[#allocation2 + $0x28] sm:$0xff] 0.0
          %262 = vst [vmem:[#allocation2 + $0x30] sm:$0xff] 0.0
          %263 = vst [vmem:[#allocation2 + $0x38] sm:$0xff] 0.0
          %264 = vst [vmem:[#allocation2 + $0x40] sm:$0xff] 0.0
          %265 = vst [vmem:[#allocation2 + $0x48] sm:$0xff] 0.0
          %266 = vst [vmem:[#allocation2 + $0x50] sm:$0xff] 0.0
          %267 = vst [vmem:[#allocation2 + $0x58] sm:$0xff] 0.0
          %268 = vst [vmem:[#allocation2 + $0x60] sm:$0xff] 0.0
          %269 = vst [vmem:[#allocation2 + $0x68] sm:$0xff] 0.0
          %270 = vst [vmem:[#allocation2 + $0x70] sm:$0xff] 0.0
          %271 = vst [vmem:[#allocation2 + $0x78] sm:$0xff] 0.0
        $region73: #{_lambda_.3} parent=64 // pred_fallthru
          _
        %v272 = vld [vmem:[#allocation2] sm:$0xff]
        %v273 = vld [vmem:[#allocation2 + $0x8] sm:$0xff]
        %v274 = vld [vmem:[#allocation2 + $0x10] sm:$0xff]
        %v275 = vld [vmem:[#allocation2 + $0x18] sm:$0xff]
        %v276 = vld [vmem:[#allocation2 + $0x20] sm:$0xff]
        %v277 = vld [vmem:[#allocation2 + $0x28] sm:$0xff]
        %v278 = vld [vmem:[#allocation2 + $0x30] sm:$0xff]
        %v279 = vld [vmem:[#allocation2 + $0x38] sm:$0xff]
        %v280 = vld [vmem:[#allocation2 + $0x40] sm:$0xff]
        %v281 = vld [vmem:[#allocation2 + $0x48] sm:$0xff]
        %v282 = vld [vmem:[#allocation2 + $0x50] sm:$0xff]
        %v283 = vld [vmem:[#allocation2 + $0x58] sm:$0xff]
        %v284 = vld [vmem:[#allocation2 + $0x60] sm:$0xff]
        %v285 = vld [vmem:[#allocation2 + $0x68] sm:$0xff]
        %v286 = vld [vmem:[#allocation2 + $0x70] sm:$0xff]
        %v287 = vld [vmem:[#allocation2 + $0x78] sm:$0xff]
        %v288 = vld [vmem:[%s220] sm:$0xf]
        %v289 = vld [vmem:[%s220 + $0x4] sm:$0xf]
        %v290 = vld [vmem:[%s220 + $0x8] sm:$0xf]
        %v291 = vld [vmem:[%s220 + $0xc] sm:$0xf]
        %v292 = vld [vmem:[%s220 + $0x10] sm:$0xf]
        %v293 = vld [vmem:[%s220 + $0x14] sm:$0xf]
        %v294 = vld [vmem:[%s220 + $0x18] sm:$0xf]
        %v295 = vld [vmem:[%s220 + $0x1c] sm:$0xf]
        %v296 = vunpack.c.l.bf16 %v288
        %v297 = vunpack.c.l.bf16 %v289
        %v298 = vunpack.c.l.bf16 %v290
        %v299 = vunpack.c.l.bf16 %v291
        %v300 = vunpack.c.l.bf16 %v292
        %v301 = vunpack.c.l.bf16 %v293
        %v302 = vunpack.c.l.bf16 %v294
        %v303 = vunpack.c.l.bf16 %v295
        %v304 = vld [vmem:[%s249] sm:$0xff]
        %v305 = vld [vmem:[%s249 + $0x8] sm:$0xff]
        %v306 = vld [vmem:[%s249 + $0x10] sm:$0xff]
        %v307 = vld [vmem:[%s249 + $0x18] sm:$0xff]
        %v308 = vld [vmem:[%s249 + $0x20] sm:$0xff]
        %v309 = vld [vmem:[%s249 + $0x28] sm:$0xff]
        %v310 = vld [vmem:[%s249 + $0x30] sm:$0xff]
        %v311 = vld [vmem:[%s249 + $0x38] sm:$0xff]
        %312 = vxpose.xlu0.b32.start [1/16] %v296, 128
        %313 = vxpose.xlu0.b32.cont [2/16] %v297, 128
        %314 = vxpose.xlu0.b32.cont [3/16] %v298, 128
        %315 = vxpose.xlu0.b32.cont [4/16] %v299, 128
        %316 = vxpose.xlu0.b32.cont [5/16] %v300, 128
        %317 = vxpose.xlu0.b32.cont [6/16] %v301, 128
        %318 = vxpose.xlu0.b32.cont [7/16] %v302, 128
        %319 = vxpose.xlu0.b32.cont [8/16] %v303, 128
        %320 = vxpose.xlu0.b32.cont [9/16] 0.0, 128
        %321 = vxpose.xlu0.b32.cont [10/16] 0.0, 128
        %322 = vxpose.xlu0.b32.cont [11/16] 0.0, 128
        %323 = vxpose.xlu0.b32.cont [12/16] 0.0, 128
        %324 = vxpose.xlu0.b32.cont [13/16] 0.0, 128
        %325 = vxpose.xlu0.b32.cont [14/16] 0.0, 128
        %326 = vxpose.xlu0.b32.cont [15/16] 0.0, 128
        %327 = vxpose.xlu0.b32.end [16/16] 0.0, 128
        %v328 = vpop.trf.xlu0
        %v329 = vpop.trf.xlu0
        %v330 = vpop.trf.xlu0
        %v331 = vpop.trf.xlu0
        %v332 = vpop.trf.xlu0
        %v333 = vpop.trf.xlu0
        %v334 = vpop.trf.xlu0
        %v335 = vpop.trf.xlu0
        %v336 = vpop.trf.xlu0
        %v337 = vpop.trf.xlu0
        %v338 = vpop.trf.xlu0
        %v339 = vpop.trf.xlu0
        %v340 = vpop.trf.xlu0
        %v341 = vpop.trf.xlu0
        %v342 = vpop.trf.xlu0
        %v343 = vpop.trf.xlu0
        %vm344 = vcmask 523264
        %v346 = vsel %vm344, %v328, 0
        %v349 = vsel %vm344, %v329, 0
        %v352 = vsel %vm344, %v330, 0
        %v355 = vsel %vm344, %v331, 0
        %v358 = vsel %vm344, %v332, 0
        %v361 = vsel %vm344, %v333, 0
        %v364 = vsel %vm344, %v334, 0
        %v367 = vsel %vm344, %v335, 0
        %v370 = vsel %vm344, %v336, 0
        %v373 = vsel %vm344, %v337, 0
        %v376 = vsel %vm344, %v338, 0
        %v379 = vsel %vm344, %v339, 0
        %v382 = vsel %vm344, %v340, 0
        %v385 = vsel %vm344, %v341, 0
        %v388 = vsel %vm344, %v342, 0
        %v391 = vsel %vm344, %v343, 0
        %393 = vmatprep.subr.mxu0 0.0
        %394 = vmatpush1.msra.mxu0 %v304
        %395 = vmatprep.subr.mxu0 0.0
        %396 = vmatpush1.msra.mxu0 %v305
        %397 = vmatprep.subr.mxu0 0.0
        %398 = vmatpush1.msra.mxu0 %v306
        %399 = vmatprep.subr.mxu0 0.0
        %400 = vmatpush1.msra.mxu0 %v307
        %401 = vmatprep.subr.mxu0 0.0
        %402 = vmatpush1.msra.mxu0 %v308
        %403 = vmatprep.subr.mxu0 0.0
        %404 = vmatpush1.msra.mxu0 %v309
        %405 = vmatprep.subr.mxu0 0.0
        %406 = vmatpush1.msra.mxu0 %v310
        %407 = vmatprep.subr.mxu0 0.0
        %408 = vmatpush1.msra.mxu0 %v311
        %409 = vmatprep.subr.mxu0 0.0
        %410 = vmatpush1.msra.mxu0 0.0
        %411 = vmatprep.subr.mxu0 0.0
        %412 = vmatpush1.msra.mxu0 0.0
        %413 = vmatprep.subr.mxu0 0.0
        %414 = vmatpush1.msra.mxu0 0.0
        %415 = vmatprep.subr.mxu0 0.0
        %416 = vmatpush1.msra.mxu0 0.0
        %417 = vmatprep.subr.mxu0 0.0
        %418 = vmatpush1.msra.mxu0 0.0
        %419 = vmatprep.subr.mxu0 0.0
        %420 = vmatpush1.msra.mxu0 0.0
        %421 = vmatprep.subr.mxu0 0.0
        %422 = vmatpush1.msra.mxu0 0.0
        %423 = vmatprep.subr.mxu0 0.0
        %424 = vmatpush1.msra.mxu0 0.0
        %425 = vmatprep.subr.mxu0 0.0
        %426 = vmatpush1.msra.mxu0 0.0
        %427 = vmatprep.subr.mxu0 0.0
        %428 = vmatpush1.msra.mxu0 0.0
        %429 = vmatprep.subr.mxu0 0.0
        %430 = vmatpush1.msra.mxu0 0.0
        %431 = vmatprep.subr.mxu0 0.0
        %432 = vmatpush1.msra.mxu0 0.0
        %433 = vmatprep.subr.mxu0 0.0
        %434 = vmatpush1.msra.mxu0 0.0
        %435 = vmatprep.subr.mxu0 0.0
        %436 = vmatpush1.msra.mxu0 0.0
        %437 = vmatprep.subr.mxu0 0.0
        %438 = vmatpush1.msra.mxu0 0.0
        %439 = vmatprep.subr.mxu0 0.0
        %440 = vmatpush1.msra.mxu0 0.0
        %441 = vmatprep.subr.mxu0 0.0
        %442 = vmatpush1.msra.mxu0 0.0
        %443 = vmatprep.subr.mxu0 0.0
        %444 = vmatpush1.msra.mxu0 0.0
        %445 = vmatprep.subr.mxu0 0.0
        %446 = vmatpush1.msra.mxu0 0.0
        %447 = vmatprep.subr.mxu0 0.0
        %448 = vmatpush1.msra.mxu0 0.0
        %449 = vmatprep.subr.mxu0 0.0
        %450 = vmatpush1.msra.mxu0 0.0
        %451 = vmatprep.subr.mxu0 0.0
        %452 = vmatpush1.msra.mxu0 0.0
        %453 = vmatprep.subr.mxu0 0.0
        %454 = vmatpush1.msra.mxu0 0.0
        %455 = vmatprep.subr.mxu0 0.0
        %456 = vmatpush1.msra.mxu0 0.0
        %457 = vmatprep.mubr.f32.mxu0 0.0
        %458 = vmatmul.mubr.f32.gmra.mrb[0].mxu0 %v346
        %v459 = vpop.f32.mrb[0].mxu0
        %v460 = vadd.f32 0.0, %v459
        %v461 = vpop.f32.mrb[0].mxu0
        %462 = vmatprep.mubr.f32.mxu0 0.0
        %463 = vmatmul.mubr.f32.gmra.mrb[0].mxu0 %v349
        %v464 = vpop.f32.mrb[0].mxu0
        %v465 = vadd.f32 0.0, %v464
        %v466 = vpop.f32.mrb[0].mxu0
        %467 = vmatprep.mubr.f32.mxu0 0.0
        %468 = vmatmul.mubr.f32.gmra.mrb[0].mxu0 %v352
        %v469 = vpop.f32.mrb[0].mxu0
        %v470 = vadd.f32 0.0, %v469
        %v471 = vpop.f32.mrb[0].mxu0
        %472 = vmatprep.mubr.f32.mxu0 0.0
        %473 = vmatmul.mubr.f32.gmra.mrb[0].mxu0 %v355
        %v474 = vpop.f32.mrb[0].mxu0
        %v475 = vadd.f32 0.0, %v474
        %v476 = vpop.f32.mrb[0].mxu0
        %477 = vmatprep.mubr.f32.mxu0 0.0
        %478 = vmatmul.mubr.f32.gmra.mrb[0].mxu0 %v358
        %v479 = vpop.f32.mrb[0].mxu0
        %v480 = vadd.f32 0.0, %v479
        %v481 = vpop.f32.mrb[0].mxu0
        %482 = vmatprep.mubr.f32.mxu0 0.0
        %483 = vmatmul.mubr.f32.gmra.mrb[0].mxu0 %v361
        %v484 = vpop.f32.mrb[0].mxu0
        %v485 = vadd.f32 0.0, %v484
        %v486 = vpop.f32.mrb[0].mxu0
        %487 = vmatprep.mubr.f32.mxu0 0.0
        %488 = vmatmul.mubr.f32.gmra.mrb[0].mxu0 %v364
        %v489 = vpop.f32.mrb[0].mxu0
        %v490 = vadd.f32 0.0, %v489
        %v491 = vpop.f32.mrb[0].mxu0
        %492 = vmatprep.mubr.f32.mxu0 0.0
        %493 = vmatmul.mubr.f32.gmra.mrb[0].mxu0 %v367
        %v494 = vpop.f32.mrb[0].mxu0
        %v495 = vadd.f32 0.0, %v494
        %v496 = vpop.f32.mrb[0].mxu0
        %497 = vmatprep.mubr.f32.mxu0 0.0
        %498 = vmatmul.mubr.f32.gmra.mrb[0].mxu0 %v370
        %v499 = vpop.f32.mrb[0].mxu0
        %v500 = vadd.f32 0.0, %v499
        %v501 = vpop.f32.mrb[0].mxu0
        %502 = vmatprep.mubr.f32.mxu0 0.0
        %503 = vmatmul.mubr.f32.gmra.mrb[0].mxu0 %v373
        %v504 = vpop.f32.mrb[0].mxu0
        %v505 = vadd.f32 0.0, %v504
        %v506 = vpop.f32.mrb[0].mxu0
        %507 = vmatprep.mubr.f32.mxu0 0.0
        %508 = vmatmul.mubr.f32.gmra.mrb[0].mxu0 %v376
        %v509 = vpop.f32.mrb[0].mxu0
        %v510 = vadd.f32 0.0, %v509
        %v511 = vpop.f32.mrb[0].mxu0
        %512 = vmatprep.mubr.f32.mxu0 0.0
        %513 = vmatmul.mubr.f32.gmra.mrb[0].mxu0 %v379
        %v514 = vpop.f32.mrb[0].mxu0
        %v515 = vadd.f32 0.0, %v514
        %v516 = vpop.f32.mrb[0].mxu0
        %517 = vmatprep.mubr.f32.mxu0 0.0
        %518 = vmatmul.mubr.f32.gmra.mrb[0].mxu0 %v382
        %v519 = vpop.f32.mrb[0].mxu0
        %v520 = vadd.f32 0.0, %v519
        %v521 = vpop.f32.mrb[0].mxu0
        %522 = vmatprep.mubr.f32.mxu0 0.0
        %523 = vmatmul.mubr.f32.gmra.mrb[0].mxu0 %v385
        %v524 = vpop.f32.mrb[0].mxu0
        %v525 = vadd.f32 0.0, %v524
        %v526 = vpop.f32.mrb[0].mxu0
        %527 = vmatprep.mubr.f32.mxu0 0.0
        %528 = vmatmul.mubr.f32.gmra.mrb[0].mxu0 %v388
        %v529 = vpop.f32.mrb[0].mxu0
        %v530 = vadd.f32 0.0, %v529
        %v531 = vpop.f32.mrb[0].mxu0
        %532 = vmatprep.mubr.f32.mxu0 0.0
        %533 = vmatmul.mubr.f32.gmra.mrb[0].mxu0 %v391
        %v534 = vpop.f32.mrb[0].mxu0
        %v535 = vadd.f32 0.0, %v534
        %v536 = vpop.f32.mrb[0].mxu0
        %537 = vdwg.mxu0
        %v538 = vadd.f32 %v272, %v460
        %v539 = vadd.f32 %v273, %v465
        %v540 = vadd.f32 %v274, %v470
        %v541 = vadd.f32 %v275, %v475
        %v542 = vadd.f32 %v276, %v480
        %v543 = vadd.f32 %v277, %v485
        %v544 = vadd.f32 %v278, %v490
        %v545 = vadd.f32 %v279, %v495
        %v546 = vadd.f32 %v280, %v500
        %v547 = vadd.f32 %v281, %v505
        %v548 = vadd.f32 %v282, %v510
        %v549 = vadd.f32 %v283, %v515
        %v550 = vadd.f32 %v284, %v520
        %v551 = vadd.f32 %v285, %v525
        %v552 = vadd.f32 %v286, %v530
        %v553 = vadd.f32 %v287, %v535
        %554 = vst [vmem:[#allocation2] sm:$0xff] %v538
        %555 = vst [vmem:[#allocation2 + $0x8] sm:$0xff] %v539
        %556 = vst [vmem:[#allocation2 + $0x10] sm:$0xff] %v540
        %557 = vst [vmem:[#allocation2 + $0x18] sm:$0xff] %v541
        %558 = vst [vmem:[#allocation2 + $0x20] sm:$0xff] %v542
        %559 = vst [vmem:[#allocation2 + $0x28] sm:$0xff] %v543
        %560 = vst [vmem:[#allocation2 + $0x30] sm:$0xff] %v544
        %561 = vst [vmem:[#allocation2 + $0x38] sm:$0xff] %v545
        %562 = vst [vmem:[#allocation2 + $0x40] sm:$0xff] %v546
        %563 = vst [vmem:[#allocation2 + $0x48] sm:$0xff] %v547
        %564 = vst [vmem:[#allocation2 + $0x50] sm:$0xff] %v548
        %565 = vst [vmem:[#allocation2 + $0x58] sm:$0xff] %v549
        %566 = vst [vmem:[#allocation2 + $0x60] sm:$0xff] %v550
        %567 = vst [vmem:[#allocation2 + $0x68] sm:$0xff] %v551
        %568 = vst [vmem:[#allocation2 + $0x70] sm:$0xff] %v552
        %569 = vst [vmem:[#allocation2 + $0x78] sm:$0xff] %v553
        %p570 = scmp.eq.s32.totalorder %s21, 3
        // Predicated region
        $region74: #{_lambda_.3} parent=64 // pred_check
          %p571 = pneg %p570
        $region75: #{_lambda_.3} parent=64 // pred_check_branch
          %573 = sbr.rel (%p571) target = $region77
        $region76: #{_lambda_.3} parent=64 // pred_region
          %v574 = vld [vmem:[#allocation2] sm:$0xff]
          %v575 = vld [vmem:[#allocation2 + $0x8] sm:$0xff]
          %v576 = vld [vmem:[#allocation2 + $0x10] sm:$0xff]
          %v577 = vld [vmem:[#allocation2 + $0x18] sm:$0xff]
          %v578 = vld [vmem:[#allocation2 + $0x20] sm:$0xff]
          %v579 = vld [vmem:[#allocation2 + $0x28] sm:$0xff]
          %v580 = vld [vmem:[#allocation2 + $0x30] sm:$0xff]
          %v581 = vld [vmem:[#allocation2 + $0x38] sm:$0xff]
          %v582 = vld [vmem:[#allocation2 + $0x40] sm:$0xff]
          %v583 = vld [vmem:[#allocation2 + $0x48] sm:$0xff]
          %v584 = vld [vmem:[#allocation2 + $0x50] sm:$0xff]
          %v585 = vld [vmem:[#allocation2 + $0x58] sm:$0xff]
          %v586 = vld [vmem:[#allocation2 + $0x60] sm:$0xff]
          %v587 = vld [vmem:[#allocation2 + $0x68] sm:$0xff]
          %v588 = vld [vmem:[#allocation2 + $0x70] sm:$0xff]
          %v589 = vld [vmem:[#allocation2 + $0x78] sm:$0xff]
          %590 = vst [vmem:[%s243] sm:$0xff] %v574
          %591 = vst [vmem:[%s243 + $0x8] sm:$0xff] %v575
          %592 = vst [vmem:[%s243 + $0x10] sm:$0xff] %v576
          %593 = vst [vmem:[%s243 + $0x18] sm:$0xff] %v577
          %594 = vst [vmem:[%s243 + $0x20] sm:$0xff] %v578
          %595 = vst [vmem:[%s243 + $0x28] sm:$0xff] %v579
          %596 = vst [vmem:[%s243 + $0x30] sm:$0xff] %v580
          %597 = vst [vmem:[%s243 + $0x38] sm:$0xff] %v581
          %598 = vst [vmem:[%s243 + $0x40] sm:$0xff] %v582
          %599 = vst [vmem:[%s243 + $0x48] sm:$0xff] %v583
          %600 = vst [vmem:[%s243 + $0x50] sm:$0xff] %v584
          %601 = vst [vmem:[%s243 + $0x58] sm:$0xff] %v585
          %602 = vst [vmem:[%s243 + $0x60] sm:$0xff] %v586
          %603 = vst [vmem:[%s243 + $0x68] sm:$0xff] %v587
          %604 = vst [vmem:[%s243 + $0x70] sm:$0xff] %v588
          %605 = vst [vmem:[%s243 + $0x78] sm:$0xff] %v589
        $region77: #{_lambda_.3} parent=64 // pred_fallthru
          _
        %s606 = sand.u32 %s90, 1
        %s607 = scalar_lea.sflag [#allocation5], %s606
        %s608 = sand.u32 %s90, 1
        %s609 = smul.addr %s608, 128
        %s610 = scalar_lea.vmem [#allocation4], %s609
        // Predicated region
        $region78: #{_lambda_.3} parent=64 // pred_check
          %p611 = pneg %p100
        $region79: #{_lambda_.3} parent=64 // pred_check_branch
          %613 = sbr.rel (%p611) target = $region81
        $region80: #{_lambda_.3} parent=64 // pred_region
          %s614 = smul.u32 16, %s20
          %s616 = ssub.s32 2048, 2048
          %617 = vsyncadd %s607, %s616
          %s618 = smul.addr %s614, 128
          %s619 = scalar_lea.hbm %s2, %s618
          %s620 = sshll.u32 %s610, 4
          %s621 = int_to_ptr.vmem [resolvable:$true] %s620
          %626 = dma.vmem_to_hbm [thread:$0]  %s621, 2048, %s619, %s607, 128, 128, 8
        $region81: #{_lambda_.3} parent=64 // pred_fallthru
          _
      $region65: #{_lambda_.3} parent=5 // pred_fallthru
        _
      %p627 = scmp.le.s32.totalorder 2, %s11
      // Predicated region
      $region82: #{_lambda_.3} parent=5 // pred_check
        %p628 = pneg %p627
      $region83: #{_lambda_.3} parent=5 // pred_check_branch
        %630 = sbr.rel (%p628) target = $region85
      $region84: #{_lambda_.3} parent=5 // pred_region
        %s631 = ssub.s32 %s11, 2
        // Predicated region
        $region86: #{_lambda_.3} parent=84 // pred_check
          %p632 = pneg %p106
        $region87: #{_lambda_.3} parent=84 // pred_check_branch
          %634 = sbr.rel (%p632) target = $region89
        $region88: #{_lambda_.3} parent=84 // pred_region
          %s635 = sand.u32 %s91, 1
          %s636 = scalar_lea.sflag [#allocation5], %s635
          %s637 = sand.u32 %s91, 1
          %s638 = smul.addr %s637, 128
          %s639 = scalar_lea.vmem [#allocation4], %s638
          %640 = dma.done %s636, 2048
        $region89: #{_lambda_.3} parent=84 // pred_fallthru
          _
      $region85: #{_lambda_.3} parent=5 // pred_fallthru
        _
    $region6: #{_lambda_.3} parent=1 // loop_footer
      %s15 = sadd.s32 1, %s11
    $region7: #{_lambda_.3} parent=1 // loop_footer_branch
      %10 = sbr.rel target = $region3
    $region8: #{_lambda_.3} parent=1 // loop_exit
      _
    %641 = vsyncpa [#allocation5], 1
    %s642 = scalar_lea.sflag [#allocation5], 1
    %643 = vsyncpa %s642, 1

// kernel: _lambda_.2
$region0: #{_lambda_.2}
  #allocation0 [shape = 'u32[]', space=smem, size = 0x4, offset = 0x4, fixed_abs, tag = 'smem constant byte address 0x4 - core index']
  #allocation1 [shape = 'u32[144,128]{1,0:T(1,128)}', space=vmem, size = 0x12000, scoped, tag = 'internal scratch']
  #allocation2 [shape = 'f32[64,128]{1,0:T(8,128)}', space=vmem, size = 0x8000, scoped, tag = 'scratch operand']
  %s0 = inlined_call_operand.vmem [shape: bf16[256,384], index: 0, kind: input, shape index: {}]
  %s1 = inlined_call_operand.vmem [shape: f32[384,128], index: 1, kind: input, shape index: {}]
  %s2 = inlined_call_operand.vmem [shape: f32[256,128], index: 2, kind: input, shape index: {}]
  %s3 = inlined_call_operand.vmem [shape: f32[256,128], index: 3, kind: input, shape index: {}]
  %s4 = inlined_call_operand.vmem [shape: f32[1,128], index: 4, kind: input, shape index: {}]
  %s5 = inlined_call_operand.vmem [shape: f32[256,128], index: 5, kind: output, shape index: {}]
  %s6 = sld [smem:[#allocation0]]
  $region102: #{_lambda_.2} parent=0
    _
  %s8 = ssub.s32 1, %s6
  %s9 = scalar_select 0, %s8, %s6
  $region1: #{_lambda_.2} parent=0
    #allocation3 [shape = 'u8[32768]{0}', space=vmem, size = 0x8000, scoped, tag = 'input window, operand 0']
    loop: start=0, step=1, limit=14
    $region2: #{_lambda_.2} parent=1 // loop_pre_header
      _
    $region3: #{_lambda_.2} parent=1 // loop_header
      %s11 = sphi 0, %s15
      %p12 = scmp.ge.s32.totalorder %s11, 14
      %s18 = sphi 0, %s30
      %s19 = sphi 0, %s26
      %s20 = sphi 0, %s18
      %s21 = sphi 0, %s19
      %s22 = sphi 0, %s20
      %s23 = sphi 0, %s21
      %s35 = sphi 0, %s37
      %s38 = sphi 0, %s35
      %s39 = sphi 0, %s38
      %s55 = sphi 0, %s39
      %s61 = sphi 0, %s63
      %s64 = sphi 0, %s61
      %s65 = sphi 0, %s64
      %s81 = sphi 0, %s65
      %s87 = sphi 0, %s89
      %s90 = sphi 0, %s87
      %s91 = sphi 0, %s90
      %s107 = sphi 0, %s91
      %s111 = sphi 0, %s111
      %s113 = sphi 0, %s111
      %s114 = sphi 0, %s113
      %s128 = sphi 0, %s114
      %s132 = sphi 0, %s132
      %s134 = sphi 0, %s132
      %s135 = sphi 0, %s134
      %s149 = sphi 0, %s135
      %s155 = sphi 0, %s157
      %s158 = sphi 0, %s155
      %s159 = sphi 0, %s158
      %s175 = sphi 0, %s159
    $region4: #{_lambda_.2} parent=1 // loop_header_branch
      %14 = sbr.rel (%p12) target = $region8
    $region5: #{_lambda_.2} parent=1 // loop_body
      %s16 = ssub.s32 %s11, 1
      %s17 = ssub.s32 %s11, 2
      %s24 = sadd.s32 1, %s19
      %p25 = scmp.ge.s32.totalorder %s24, 3
      %s26 = scalar_select %p25, 0, %s24
      %s27 = sadd.s32 1, %s18
      %s28 = scalar_select %p25, %s27, %s18
      %p29 = scmp.ge.s32.totalorder %s28, 4
      %s30 = scalar_select %p29, 0, %s28
      %s31 = ssub.s32 %s18, %s30
      %s32 = ssub.s32 %s19, %s26
      %s33 = sor.u32 %s31, %s32
      %p34 = scmp.eq.s32.totalorder %s33, 0
      %s36 = sadd.s32 %s35, 1
      %s37 = scalar_select %p34, %s35, %s36
      %p40 = pneg %p34
      %p41 = scmp.eq.s32.totalorder %s11, 11
      %p42 = por %p40, %p41
      %p43 = scmp.ne.s32.totalorder %s35, %s38
      %p44 = scmp.eq.s32.totalorder %s11, 0
      %p45 = por %p43, %p44
      %p46 = scmp.ne.s32.totalorder %s35, %s38
      %p47 = scmp.eq.s32.totalorder %s16, 11
      %p48 = por %p46, %p47
      %p49 = scmp.ne.s32.totalorder %s38, %s39
      %p50 = scmp.eq.s32.totalorder %s16, 0
      %p51 = por %p49, %p50
      %p52 = scmp.ne.s32.totalorder %s38, %s39
      %p53 = scmp.eq.s32.totalorder %s17, 11
      %p54 = por %p52, %p53
      %p56 = scmp.ne.s32.totalorder %s39, %s55
      %p57 = scmp.eq.s32.totalorder %s17, 0
      %p58 = por %p56, %p57
      %s59 = ssub.s32 %s19, %s26
      %p60 = scmp.eq.s32.totalorder %s59, 0
      %s62 = sadd.s32 %s61, 1
      %s63 = scalar_select %p60, %s61, %s62
      %p66 = pneg %p60
      %p67 = scmp.eq.s32.totalorder %s11, 11
      %p68 = por %p66, %p67
      %p69 = scmp.ne.s32.totalorder %s61, %s64
      %p70 = scmp.eq.s32.totalorder %s11, 0
      %p71 = por %p69, %p70
      %p72 = scmp.ne.s32.totalorder %s61, %s64
      %p73 = scmp.eq.s32.totalorder %s16, 11
      %p74 = por %p72, %p73
      %p75 = scmp.ne.s32.totalorder %s64, %s65
      %p76 = scmp.eq.s32.totalorder %s16, 0
      %p77 = por %p75, %p76
      %p78 = scmp.ne.s32.totalorder %s64, %s65
      %p79 = scmp.eq.s32.totalorder %s17, 11
      %p80 = por %p78, %p79
      %p82 = scmp.ne.s32.totalorder %s65, %s81
      %p83 = scmp.eq.s32.totalorder %s17, 0
      %p84 = por %p82, %p83
      %s85 = ssub.s32 %s18, %s30
      %p86 = scmp.eq.s32.totalorder %s85, 0
      %s88 = sadd.s32 %s87, 1
      %s89 = scalar_select %p86, %s87, %s88
      %p92 = pneg %p86
      %p93 = scmp.eq.s32.totalorder %s11, 11
      %p94 = por %p92, %p93
      %p95 = scmp.ne.s32.totalorder %s87, %s90
      %p96 = scmp.eq.s32.totalorder %s11, 0
      %p97 = por %p95, %p96
      %p98 = scmp.ne.s32.totalorder %s87, %s90
      %p99 = scmp.eq.s32.totalorder %s16, 11
      %p100 = por %p98, %p99
      %p101 = scmp.ne.s32.totalorder %s90, %s91
      %p102 = scmp.eq.s32.totalorder %s16, 0
      %p103 = por %p101, %p102
      %p104 = scmp.ne.s32.totalorder %s90, %s91
      %p105 = scmp.eq.s32.totalorder %s17, 11
      %p106 = por %p104, %p105
      %p108 = scmp.ne.s32.totalorder %s91, %s107
      %p109 = scmp.eq.s32.totalorder %s17, 0
      %p110 = por %p108, %p109
      %s112 = sadd.s32 %s111, 1
      %p115 = scmp.eq.s32.totalorder %s11, 11
      %p116 = scmp.ne.s32.totalorder %s111, %s113
      %p117 = scmp.eq.s32.totalorder %s11, 0
      %p118 = por %p116, %p117
      %p119 = scmp.ne.s32.totalorder %s111, %s113
      %p120 = scmp.eq.s32.totalorder %s16, 11
      %p121 = por %p119, %p120
      %p122 = scmp.ne.s32.totalorder %s113, %s114
      %p123 = scmp.eq.s32.totalorder %s16, 0
      %p124 = por %p122, %p123
      %p125 = scmp.ne.s32.totalorder %s113, %s114
      %p126 = scmp.eq.s32.totalorder %s17, 11
      %p127 = por %p125, %p126
      %p129 = scmp.ne.s32.totalorder %s114, %s128
      %p130 = scmp.eq.s32.totalorder %s17, 0
      %p131 = por %p129, %p130
      %s133 = sadd.s32 %s132, 1
      %p136 = scmp.eq.s32.totalorder %s11, 11
      %p137 = scmp.ne.s32.totalorder %s132, %s134
      %p138 = scmp.eq.s32.totalorder %s11, 0
      %p139 = por %p137, %p138
      %p140 = scmp.ne.s32.totalorder %s132, %s134
      %p141 = scmp.eq.s32.totalorder %s16, 11
      %p142 = por %p140, %p141
      %p143 = scmp.ne.s32.totalorder %s134, %s135
      %p144 = scmp.eq.s32.totalorder %s16, 0
      %p145 = por %p143, %p144
      %p146 = scmp.ne.s32.totalorder %s134, %s135
      %p147 = scmp.eq.s32.totalorder %s17, 11
      %p148 = por %p146, %p147
      %p150 = scmp.ne.s32.totalorder %s135, %s149
      %p151 = scmp.eq.s32.totalorder %s17, 0
      %p152 = por %p150, %p151
      %s153 = ssub.s32 %s18, %s30
      %p154 = scmp.eq.s32.totalorder %s153, 0
      %s156 = sadd.s32 %s155, 1
      %s157 = scalar_select %p154, %s155, %s156
      %p160 = pneg %p154
      %p161 = scmp.eq.s32.totalorder %s11, 11
      %p162 = por %p160, %p161
      %p163 = scmp.ne.s32.totalorder %s155, %s158
      %p164 = scmp.eq.s32.totalorder %s11, 0
      %p165 = por %p163, %p164
      %p166 = scmp.ne.s32.totalorder %s155, %s158
      %p167 = scmp.eq.s32.totalorder %s16, 11
      %p168 = por %p166, %p167
      %p169 = scmp.ne.s32.totalorder %s158, %s159
      %p170 = scmp.eq.s32.totalorder %s16, 0
      %p171 = por %p169, %p170
      %p172 = scmp.ne.s32.totalorder %s158, %s159
      %p173 = scmp.eq.s32.totalorder %s17, 11
      %p174 = por %p172, %p173
      %p176 = scmp.ne.s32.totalorder %s159, %s175
      %p177 = scmp.eq.s32.totalorder %s17, 0
      %p178 = por %p176, %p177
      %p179 = scmp.le.s32.totalorder 1, %s11
      %p180 = scmp.lt.s32.totalorder %s11, 13
      %p181 = pnand %p179, %p180
      %p182 = pneg %p181
      // Predicated region
      $region9: #{_lambda_.2} parent=5 // pred_check
        _
      $region10: #{_lambda_.2} parent=5 // pred_check_branch
        %184 = sbr.rel (%p181) target = $region12
      $region11: #{_lambda_.2} parent=5 // pred_region
        %s185 = ssub.s32 %s11, 1
        // Predicated region
        $region13: #{_lambda_.2} parent=11 // pred_check
          %p186 = pneg %p124
        $region14: #{_lambda_.2} parent=11 // pred_check_branch
          %188 = sbr.rel (%p186) target = $region16
        $region15: #{_lambda_.2} parent=11 // pred_region
          _
        $region16: #{_lambda_.2} parent=11 // pred_fallthru
          _
        // Predicated region
        $region17: #{_lambda_.2} parent=11 // pred_check
          %p189 = pneg %p145
        $region18: #{_lambda_.2} parent=11 // pred_check_branch
          %191 = sbr.rel (%p189) target = $region20
        $region19: #{_lambda_.2} parent=11 // pred_region
          _
        $region20: #{_lambda_.2} parent=11 // pred_fallthru
          _
      $region12: #{_lambda_.2} parent=5 // pred_fallthru
        _
      %p192 = scmp.lt.s32.totalorder %s11, 12
      // Predicated region
      $region21: #{_lambda_.2} parent=5 // pred_check
        %p193 = pneg %p192
      $region22: #{_lambda_.2} parent=5 // pred_check_branch
        %195 = sbr.rel (%p193) target = $region24
      $region23: #{_lambda_.2} parent=5 // pred_region
        // Predicated region
        $region25: #{_lambda_.2} parent=23 // pred_check
          %p196 = pneg %p45
        $region26: #{_lambda_.2} parent=23 // pred_check_branch
          %198 = sbr.rel (%p196) target = $region28
        $region27: #{_lambda_.2} parent=23 // pred_region
          %s199 = sand.u32 %s35, 1
          %s200 = sand.u32 %s35, 1
          %s201 = smul.addr %s200, 32
          %s202 = scalar_lea.vmem [#allocation3], %s201
          %s203 = smul.u32 8, %s18
          %s204 = smul.addr %s203, 3
          %s205 = sadd.s32 %s19, %s204
          %s206 = smul.addr %s205, 4
          %s207 = scalar_lea.vmem %s0, %s206
          // Predicated region
          $region29: #{_lambda_.2} parent=27 // pred_check
            _
          $region30: #{_lambda_.2} parent=27 // pred_check_branch
            %209 = sbr.rel (0) target = $region32
          $region31: #{_lambda_.2} parent=27 // pred_region
            // Predicated region
            $region33: #{_lambda_.2} parent=31 // pred_check
              _
            $region34: #{_lambda_.2} parent=31 // pred_check_branch
              %211 = sbr.rel target = $region36
            $region35: #{_lambda_.2} parent=31 // pred_region
              // Predicated region
              $region48: #{_lambda_.2} parent=35 // pred_check
                _
              $region49: #{_lambda_.2} parent=35 // pred_check_branch
                %240 = sbr.rel (0) target = $region51
              $region50: #{_lambda_.2} parent=35 // pred_region
                loop: start=0, step=1, limit=1
                $region52: #{_lambda_.2} parent=50 // loop_pre_header
                  _
                $region53: #{_lambda_.2} parent=50 // loop_header
                  %s242 = sphi 0, %s246
                  %p243 = scmp.ge.s32.totalorder %s242, 1
                  %s247 = sphi %s207, %s207
                  %s248 = sphi %s202, %s202
                $region54: #{_lambda_.2} parent=50 // loop_header_branch
                  %245 = sbr.rel (%p243) target = $region58
                $region55: #{_lambda_.2} parent=50 // loop_body
                  _
                $region56: #{_lambda_.2} parent=50 // loop_footer
                  %s246 = sadd.s32 1, %s242
                $region57: #{_lambda_.2} parent=50 // loop_footer_branch
                  %241 = sbr.rel target = $region53
                $region58: #{_lambda_.2} parent=50 // loop_exit
                  _
                loop: start=0, step=1, limit=1
                $region59: #{_lambda_.2} parent=50 // loop_pre_header
                  _
                $region60: #{_lambda_.2} parent=50 // loop_header
                  %s251 = sphi 0, %s255
                  %p252 = scmp.ge.s32.totalorder %s251, 1
                  %s256 = sphi %s207, %s207
                  %s257 = sphi %s202, %s202
                $region61: #{_lambda_.2} parent=50 // loop_header_branch
                  %254 = sbr.rel (%p252) target = $region65
                $region62: #{_lambda_.2} parent=50 // loop_body
                  %v258 = vld [vmem:[%s256] sm:$0xf]
                  %259 = vst [vmem:[%s257] sm:$0xf] %v258
                  %v260 = vld [vmem:[%s256 + $0xc] sm:$0xf]
                  %261 = vst [vmem:[%s257 + $0x4] sm:$0xf] %v260
                  %v262 = vld [vmem:[%s256 + $0x18] sm:$0xf]
                  %263 = vst [vmem:[%s257 + $0x8] sm:$0xf] %v262
                  %v264 = vld [vmem:[%s256 + $0x24] sm:$0xf]
                  %265 = vst [vmem:[%s257 + $0xc] sm:$0xf] %v264
                  %v266 = vld [vmem:[%s256 + $0x30] sm:$0xf]
                  %267 = vst [vmem:[%s257 + $0x10] sm:$0xf] %v266
                  %v268 = vld [vmem:[%s256 + $0x3c] sm:$0xf]
                  %269 = vst [vmem:[%s257 + $0x14] sm:$0xf] %v268
                  %v270 = vld [vmem:[%s256 + $0x48] sm:$0xf]
                  %271 = vst [vmem:[%s257 + $0x18] sm:$0xf] %v270
                  %v272 = vld [vmem:[%s256 + $0x54] sm:$0xf]
                  %273 = vst [vmem:[%s257 + $0x1c] sm:$0xf] %v272
                $region63: #{_lambda_.2} parent=50 // loop_footer
                  %s255 = sadd.s32 1, %s251
                $region64: #{_lambda_.2} parent=50 // loop_footer_branch
                  %250 = sbr.rel target = $region60
                $region65: #{_lambda_.2} parent=50 // loop_exit
                  _
              $region51: #{_lambda_.2} parent=35 // pred_fallthru
                _
            $region36: #{_lambda_.2} parent=31 // pred_fallthru
              _
            // Predicated region
            $region37: #{_lambda_.2} parent=31 // pred_check
              _
            $region38: #{_lambda_.2} parent=31 // pred_check_branch
              %213 = sbr.rel (0) target = $region40
            $region39: #{_lambda_.2} parent=31 // pred_region
              loop: start=0, step=1, limit=1
              $region41: #{_lambda_.2} parent=39 // loop_pre_header
                _
              $region42: #{_lambda_.2} parent=39 // loop_header
                %s216 = sphi 0, %s220
                %p217 = scmp.ge.s32.totalorder %s216, 1
                %s221 = sphi %s207, %s207
                %s222 = sphi %s202, %s202
              $region43: #{_lambda_.2} parent=39 // loop_header_branch
                %219 = sbr.rel (%p217) target = $region47
              $region44: #{_lambda_.2} parent=39 // loop_body
                %v223 = vld [vmem:[%s221] sm:$0xf]
                %224 = vst [vmem:[%s222] sm:$0xf] %v223
                %v225 = vld [vmem:[%s221 + $0xc] sm:$0xf]
                %226 = vst [vmem:[%s222 + $0x4] sm:$0xf] %v225
                %v227 = vld [vmem:[%s221 + $0x18] sm:$0xf]
                %228 = vst [vmem:[%s222 + $0x8] sm:$0xf] %v227
                %v229 = vld [vmem:[%s221 + $0x24] sm:$0xf]
                %230 = vst [vmem:[%s222 + $0xc] sm:$0xf] %v229
                %v231 = vld [vmem:[%s221 + $0x30] sm:$0xf]
                %232 = vst [vmem:[%s222 + $0x10] sm:$0xf] %v231
                %v233 = vld [vmem:[%s221 + $0x3c] sm:$0xf]
                %234 = vst [vmem:[%s222 + $0x14] sm:$0xf] %v233
                %v235 = vld [vmem:[%s221 + $0x48] sm:$0xf]
                %236 = vst [vmem:[%s222 + $0x18] sm:$0xf] %v235
                %v237 = vld [vmem:[%s221 + $0x54] sm:$0xf]
                %238 = vst [vmem:[%s222 + $0x1c] sm:$0xf] %v237
              $region45: #{_lambda_.2} parent=39 // loop_footer
                %s220 = sadd.s32 1, %s216
              $region46: #{_lambda_.2} parent=39 // loop_footer_branch
                %215 = sbr.rel target = $region42
              $region47: #{_lambda_.2} parent=39 // loop_exit
                _
            $region40: #{_lambda_.2} parent=31 // pred_fallthru
              _
          $region32: #{_lambda_.2} parent=27 // pred_fallthru
            _
          %274 = vnop
        $region28: #{_lambda_.2} parent=23 // pred_fallthru
          _
        // Predicated region
        $region66: #{_lambda_.2} parent=23 // pred_check
          %p275 = pneg %p71
        $region67: #{_lambda_.2} parent=23 // pred_check_branch
          %277 = sbr.rel (%p275) target = $region69
        $region68: #{_lambda_.2} parent=23 // pred_region
          %s278 = smul.u32 16, %s19
          %p279 = scmp.lt.s32.totalorder %s278, 47
          %s280 = scalar_select %p279, %s278, 47
          %s281 = smul.addr %s280, 8
          %s282 = scalar_lea.vmem %s1, %s281
          %s283 = smul.u32 16, %s19
        $region69: #{_lambda_.2} parent=23 // pred_fallthru
          _
        // Predicated region
        $region70: #{_lambda_.2} parent=23 // pred_check
          %p284 = pneg %p97
        $region71: #{_lambda_.2} parent=23 // pred_check_branch
          %286 = sbr.rel (%p284) target = $region73
        $region72: #{_lambda_.2} parent=23 // pred_region
          %s287 = smul.u32 8, %s18
          %p288 = scmp.lt.s32.totalorder %s287, 31
          %s289 = scalar_select %p288, %s287, 31
          %s290 = smul.addr %s289, 8
          %s291 = scalar_lea.vmem %s2, %s290
          %s292 = smul.u32 8, %s18
        $region73: #{_lambda_.2} parent=23 // pred_fallthru
          _
      $region24: #{_lambda_.2} parent=5 // pred_fallthru
        _
      %p293 = scmp.le.s32.totalorder 1, %s11
      %p294 = scmp.lt.s32.totalorder %s11, 13
      %p295 = pnand %p293, %p294
      %p296 = pneg %p295
      // Predicated region
      $region74: #{_lambda_.2} parent=5 // pred_check
        _
      $region75: #{_lambda_.2} parent=5 // pred_check_branch
        %298 = sbr.rel (%p295) target = $region77
      $region76: #{_lambda_.2} parent=5 // pred_region
        %s299 = ssub.s32 %s11, 1
        %s300 = sand.u32 %s38, 1
        %s301 = sand.u32 %s38, 1
        %s302 = smul.addr %s301, 32
        %s303 = scalar_lea.vmem [#allocation3], %s302
        // Predicated region
        $region78: #{_lambda_.2} parent=76 // pred_check
          %p304 = pneg %p51
        $region79: #{_lambda_.2} parent=76 // pred_check_branch
          %306 = sbr.rel (%p304) target = $region81
        $region80: #{_lambda_.2} parent=76 // pred_region
          _
        $region81: #{_lambda_.2} parent=76 // pred_fallthru
          _
        %s307 = sand.u32 %s38, 1
        %s308 = sand.u32 %s38, 1
        %s309 = smul.addr %s308, 32
        %s310 = scalar_lea.vmem [#allocation3], %s309
        %p311 = pneg %p51
        %p312 = pneg %p48
        %s313 = smul.u32 16, %s21
        %p314 = scmp.lt.s32.totalorder %s313, 47
        %s315 = scalar_select %p314, %s313, 47
        %s316 = smul.addr %s315, 8
        %s317 = scalar_lea.vmem %s1, %s316
        %p318 = pneg %p77
        %p319 = pneg %p74
        %s320 = smul.u32 8, %s20
        %p321 = scmp.lt.s32.totalorder %s320, 31
        %s322 = scalar_select %p321, %s320, 31
        %s323 = smul.addr %s322, 8
        %s324 = scalar_lea.vmem %s2, %s323
        %p325 = pneg %p103
        %p326 = pneg %p100
        %p327 = pneg %p124
        %p328 = pneg %p121
        %p329 = pneg %p145
        %p330 = pneg %p142
        %p331 = pneg %p171
        %p332 = pneg %p168
        %s333 = smul.u32 8, %s20
        %p334 = scmp.lt.s32.totalorder %s333, 31
        %s335 = scalar_select %p334, %s333, 31
        %s336 = smul.addr %s335, 8
        %s337 = scalar_lea.vmem %s5, %s336
        %s338 = smul.u32 8, %s20
        %s339 = smul.u32 16, %s21
        %p340 = scmp.lt.s32.totalorder %s339, 47
        %s341 = scalar_select %p340, %s339, 47
        %s342 = smul.addr %s341, 8
        %s343 = scalar_lea.vmem %s1, %s342
        %s344 = smul.u32 16, %s21
        %s345 = smul.u32 8, %s20
        %p346 = scmp.lt.s32.totalorder %s345, 31
        %s347 = scalar_select %p346, %s345, 31
        %s348 = smul.addr %s347, 8
        %s349 = scalar_lea.vmem %s2, %s348
        %s350 = smul.u32 8, %s20
        %s351 = smul.u32 8, %s20
        %p352 = scmp.lt.s32.totalorder %s351, 31
        %s353 = scalar_select %p352, %s351, 31
        %s354 = smul.addr %s353, 8
        %s355 = scalar_lea.vmem %s5, %s354
        %s356 = smul.u32 8, %s20
        %p357 = scmp.eq.s32.totalorder %s21, 0
        // Predicated region
        $region82: #{_lambda_.2} parent=76 // pred_check
          %p358 = pneg %p357
        $region83: #{_lambda_.2} parent=76 // pred_check_branch
          %360 = sbr.rel (%p358) target = $region85
        $region84: #{_lambda_.2} parent=76 // pred_region
          %361 = vst [vmem:[#allocation2] sm:$0xff] 0.0
          %362 = vst [vmem:[#allocation2 + $0x8] sm:$0xff] 0.0
          %363 = vst [vmem:[#allocation2 + $0x10] sm:$0xff] 0.0
          %364 = vst [vmem:[#allocation2 + $0x18] sm:$0xff] 0.0
          %365 = vst [vmem:[#allocation2 + $0x20] sm:$0xff] 0.0
          %366 = vst [vmem:[#allocation2 + $0x28] sm:$0xff] 0.0
          %367 = vst [vmem:[#allocation2 + $0x30] sm:$0xff] 0.0
          %368 = vst [vmem:[#allocation2 + $0x38] sm:$0xff] 0.0
        $region85: #{_lambda_.2} parent=76 // pred_fallthru
          _
        %v369 = vld [vmem:[#allocation2] sm:$0xff]
        %v370 = vld [vmem:[#allocation2 + $0x8] sm:$0xff]
        %v371 = vld [vmem:[#allocation2 + $0x10] sm:$0xff]
        %v372 = vld [vmem:[#allocation2 + $0x18] sm:$0xff]
        %v373 = vld [vmem:[#allocation2 + $0x20] sm:$0xff]
        %v374 = vld [vmem:[#allocation2 + $0x28] sm:$0xff]
        %v375 = vld [vmem:[#allocation2 + $0x30] sm:$0xff]
        %v376 = vld [vmem:[#allocation2 + $0x38] sm:$0xff]
        %v377 = vld [vmem:[%s303] sm:$0xf]
        %v378 = vld [vmem:[%s303 + $0x4] sm:$0xf]
        %v379 = vld [vmem:[%s303 + $0x8] sm:$0xf]
        %v380 = vld [vmem:[%s303 + $0xc] sm:$0xf]
        %v381 = vld [vmem:[%s303 + $0x10] sm:$0xf]
        %v382 = vld [vmem:[%s303 + $0x14] sm:$0xf]
        %v383 = vld [vmem:[%s303 + $0x18] sm:$0xf]
        %v384 = vld [vmem:[%s303 + $0x1c] sm:$0xf]
        %v385 = vunpack.c.l.bf16 %v377
        %v386 = vunpack.c.l.bf16 %v378
        %v387 = vunpack.c.l.bf16 %v379
        %v388 = vunpack.c.l.bf16 %v380
        %v389 = vunpack.c.l.bf16 %v381
        %v390 = vunpack.c.l.bf16 %v382
        %v391 = vunpack.c.l.bf16 %v383
        %v392 = vunpack.c.l.bf16 %v384
        %v393 = vld [vmem:[%s343] sm:$0xff]
        %v394 = vld [vmem:[%s343 + $0x8] sm:$0xff]
        %v395 = vld [vmem:[%s343 + $0x10] sm:$0xff]
        %v396 = vld [vmem:[%s343 + $0x18] sm:$0xff]
        %v397 = vld [vmem:[%s343 + $0x20] sm:$0xff]
        %v398 = vld [vmem:[%s343 + $0x28] sm:$0xff]
        %v399 = vld [vmem:[%s343 + $0x30] sm:$0xff]
        %v400 = vld [vmem:[%s343 + $0x38] sm:$0xff]
        %v401 = vld [vmem:[%s343 + $0x40] sm:$0xff]
        %v402 = vld [vmem:[%s343 + $0x48] sm:$0xff]
        %v403 = vld [vmem:[%s343 + $0x50] sm:$0xff]
        %v404 = vld [vmem:[%s343 + $0x58] sm:$0xff]
        %v405 = vld [vmem:[%s343 + $0x60] sm:$0xff]
        %v406 = vld [vmem:[%s343 + $0x68] sm:$0xff]
        %v407 = vld [vmem:[%s343 + $0x70] sm:$0xff]
        %v408 = vld [vmem:[%s343 + $0x78] sm:$0xff]
        %409 = vmatprep.subr.mxu0 0.0
        %410 = vmatpush1.msra.mxu0 %v393
        %411 = vmatprep.subr.mxu0 0.0
        %412 = vmatpush1.msra.mxu0 %v394
        %413 = vmatprep.subr.mxu0 0.0
        %414 = vmatpush1.msra.mxu0 %v395
        %415 = vmatprep.subr.mxu0 0.0
        %416 = vmatpush1.msra.mxu0 %v396
        %417 = vmatprep.subr.mxu0 0.0
        %418 = vmatpush1.msra.mxu0 %v397
        %419 = vmatprep.subr.mxu0 0.0
        %420 = vmatpush1.msra.mxu0 %v398
        %421 = vmatprep.subr.mxu0 0.0
        %422 = vmatpush1.msra.mxu0 %v399
        %423 = vmatprep.subr.mxu0 0.0
        %424 = vmatpush1.msra.mxu0 %v400
        %425 = vmatprep.subr.mxu0 0.0
        %426 = vmatpush1.msra.mxu0 %v401
        %427 = vmatprep.subr.mxu0 0.0
        %428 = vmatpush1.msra.mxu0 %v402
        %429 = vmatprep.subr.mxu0 0.0
        %430 = vmatpush1.msra.mxu0 %v403
        %431 = vmatprep.subr.mxu0 0.0
        %432 = vmatpush1.msra.mxu0 %v404
        %433 = vmatprep.subr.mxu0 0.0
        %434 = vmatpush1.msra.mxu0 %v405
        %435 = vmatprep.subr.mxu0 0.0
        %436 = vmatpush1.msra.mxu0 %v406
        %437 = vmatprep.subr.mxu0 0.0
        %438 = vmatpush1.msra.mxu0 %v407
        %439 = vmatprep.subr.mxu0 0.0
        %440 = vmatpush1.msra.mxu0 %v408
        %441 = vmatprep.subr.mxu0 0.0
        %442 = vmatpush1.msra.mxu0 0.0
        %443 = vmatprep.subr.mxu0 0.0
        %444 = vmatpush1.msra.mxu0 0.0
        %445 = vmatprep.subr.mxu0 0.0
        %446 = vmatpush1.msra.mxu0 0.0
        %447 = vmatprep.subr.mxu0 0.0
        %448 = vmatpush1.msra.mxu0 0.0
        %449 = vmatprep.subr.mxu0 0.0
        %450 = vmatpush1.msra.mxu0 0.0
        %451 = vmatprep.subr.mxu0 0.0
        %452 = vmatpush1.msra.mxu0 0.0
        %453 = vmatprep.subr.mxu0 0.0
        %454 = vmatpush1.msra.mxu0 0.0
        %455 = vmatprep.subr.mxu0 0.0
        %456 = vmatpush1.msra.mxu0 0.0
        %457 = vmatprep.subr.mxu0 0.0
        %458 = vmatpush1.msra.mxu0 0.0
        %459 = vmatprep.subr.mxu0 0.0
        %460 = vmatpush1.msra.mxu0 0.0
        %461 = vmatprep.subr.mxu0 0.0
        %462 = vmatpush1.msra.mxu0 0.0
        %463 = vmatprep.subr.mxu0 0.0
        %464 = vmatpush1.msra.mxu0 0.0
        %465 = vmatprep.subr.mxu0 0.0
        %466 = vmatpush1.msra.mxu0 0.0
        %467 = vmatprep.subr.mxu0 0.0
        %468 = vmatpush1.msra.mxu0 0.0
        %469 = vmatprep.subr.mxu0 0.0
        %470 = vmatpush1.msra.mxu0 0.0
        %471 = vmatprep.subr.mxu0 0.0
        %472 = vmatpush1.msra.mxu0 0.0
        %473 = vmatprep.mubr.f32.mxu0 0.0
        %474 = vmatmul.mubr.f32.gmra.mrb[0].mxu0 %v385
        %v475 = vpop.f32.mrb[0].mxu0
        %v476 = vadd.f32 0.0, %v475
        %v477 = vpop.f32.mrb[0].mxu0
        %478 = vmatprep.mubr.f32.mxu0 0.0
        %479 = vmatmul.mubr.f32.gmra.mrb[0].mxu0 %v386
        %v480 = vpop.f32.mrb[0].mxu0
        %v481 = vadd.f32 0.0, %v480
        %v482 = vpop.f32.mrb[0].mxu0
        %483 = vmatprep.mubr.f32.mxu0 0.0
        %484 = vmatmul.mubr.f32.gmra.mrb[0].mxu0 %v387
        %v485 = vpop.f32.mrb[0].mxu0
        %v486 = vadd.f32 0.0, %v485
        %v487 = vpop.f32.mrb[0].mxu0
        %488 = vmatprep.mubr.f32.mxu0 0.0
        %489 = vmatmul.mubr.f32.gmra.mrb[0].mxu0 %v388
        %v490 = vpop.f32.mrb[0].mxu0
        %v491 = vadd.f32 0.0, %v490
        %v492 = vpop.f32.mrb[0].mxu0
        %493 = vmatprep.mubr.f32.mxu0 0.0
        %494 = vmatmul.mubr.f32.gmra.mrb[0].mxu0 %v389
        %v495 = vpop.f32.mrb[0].mxu0
        %v496 = vadd.f32 0.0, %v495
        %v497 = vpop.f32.mrb[0].mxu0
        %498 = vmatprep.mubr.f32.mxu0 0.0
        %499 = vmatmul.mubr.f32.gmra.mrb[0].mxu0 %v390
        %v500 = vpop.f32.mrb[0].mxu0
        %v501 = vadd.f32 0.0, %v500
        %v502 = vpop.f32.mrb[0].mxu0
        %503 = vmatprep.mubr.f32.mxu0 0.0
        %504 = vmatmul.mubr.f32.gmra.mrb[0].mxu0 %v391
        %v505 = vpop.f32.mrb[0].mxu0
        %v506 = vadd.f32 0.0, %v505
        %v507 = vpop.f32.mrb[0].mxu0
        %508 = vmatprep.mubr.f32.mxu0 0.0
        %509 = vmatmul.mubr.f32.gmra.mrb[0].mxu0 %v392
        %v510 = vpop.f32.mrb[0].mxu0
        %v511 = vadd.f32 0.0, %v510
        %v512 = vpop.f32.mrb[0].mxu0
        %513 = vdwg.mxu0
        %v514 = vadd.f32 %v369, %v476
        %v515 = vadd.f32 %v370, %v481
        %v516 = vadd.f32 %v371, %v486
        %v517 = vadd.f32 %v372, %v491
        %v518 = vadd.f32 %v373, %v496
        %v519 = vadd.f32 %v374, %v501
        %v520 = vadd.f32 %v375, %v506
        %v521 = vadd.f32 %v376, %v511
        %522 = vst [vmem:[#allocation2] sm:$0xff] %v514
        %523 = vst [vmem:[#allocation2 + $0x8] sm:$0xff] %v515
        %524 = vst [vmem:[#allocation2 + $0x10] sm:$0xff] %v516
        %525 = vst [vmem:[#allocation2 + $0x18] sm:$0xff] %v517
        %526 = vst [vmem:[#allocation2 + $0x20] sm:$0xff] %v518
        %527 = vst [vmem:[#allocation2 + $0x28] sm:$0xff] %v519
        %528 = vst [vmem:[#allocation2 + $0x30] sm:$0xff] %v520
        %529 = vst [vmem:[#allocation2 + $0x38] sm:$0xff] %v521
        %p530 = scmp.eq.s32.totalorder %s21, 2
        // Predicated region
        $region86: #{_lambda_.2} parent=76 // pred_check
          %p531 = pneg %p530
        $region87: #{_lambda_.2} parent=76 // pred_check_branch
          %533 = sbr.rel (%p531) target = $region89
        $region88: #{_lambda_.2} parent=76 // pred_region
          %v534 = vld [vmem:[#allocation2] sm:$0xff]
          %v535 = vld [vmem:[#allocation2 + $0x8] sm:$0xff]
          %v536 = vld [vmem:[#allocation2 + $0x10] sm:$0xff]
          %v537 = vld [vmem:[#allocation2 + $0x18] sm:$0xff]
          %v538 = vld [vmem:[#allocation2 + $0x20] sm:$0xff]
          %v539 = vld [vmem:[#allocation2 + $0x28] sm:$0xff]
          %v540 = vld [vmem:[#allocation2 + $0x30] sm:$0xff]
          %v541 = vld [vmem:[#allocation2 + $0x38] sm:$0xff]
          %v542 = vld [vmem:[%s349] sm:$0xff]
          %v543 = vld [vmem:[%s349 + $0x8] sm:$0xff]
          %v544 = vld [vmem:[%s349 + $0x10] sm:$0xff]
          %v545 = vld [vmem:[%s349 + $0x18] sm:$0xff]
          %v546 = vld [vmem:[%s349 + $0x20] sm:$0xff]
          %v547 = vld [vmem:[%s349 + $0x28] sm:$0xff]
          %v548 = vld [vmem:[%s349 + $0x30] sm:$0xff]
          %v549 = vld [vmem:[%s349 + $0x38] sm:$0xff]
          %v550 = vmul.f32 %v534, %v542
          %v551 = vmul.f32 %v535, %v543
          %v552 = vmul.f32 %v536, %v544
          %v553 = vmul.f32 %v537, %v545
          %v554 = vmul.f32 %v538, %v546
          %v555 = vmul.f32 %v539, %v547
          %v556 = vmul.f32 %v540, %v548
          %v557 = vmul.f32 %v541, %v549
          %v558 = vld [vmem:[%s3] sm:$0xff]
          %v559 = vld [vmem:[%s3 + $0x8] sm:$0xff]
          %v560 = vld [vmem:[%s3 + $0x10] sm:$0xff]
          %v561 = vld [vmem:[%s3 + $0x18] sm:$0xff]
          %v562 = vld [vmem:[%s3 + $0x20] sm:$0xff]
          %v563 = vld [vmem:[%s3 + $0x28] sm:$0xff]
          %v564 = vld [vmem:[%s3 + $0x30] sm:$0xff]
          %v565 = vld [vmem:[%s3 + $0x38] sm:$0xff]
          %v566 = vld [vmem:[%s3 + $0x40] sm:$0xff]
          %v567 = vld [vmem:[%s3 + $0x48] sm:$0xff]
          %v568 = vld [vmem:[%s3 + $0x50] sm:$0xff]
          %v569 = vld [vmem:[%s3 + $0x58] sm:$0xff]
          %v570 = vld [vmem:[%s3 + $0x60] sm:$0xff]
          %v571 = vld [vmem:[%s3 + $0x68] sm:$0xff]
          %v572 = vld [vmem:[%s3 + $0x70] sm:$0xff]
          %v573 = vld [vmem:[%s3 + $0x78] sm:$0xff]
          %v574 = vld [vmem:[%s3 + $0x80] sm:$0xff]
          %v575 = vld [vmem:[%s3 + $0x88] sm:$0xff]
          %v576 = vld [vmem:[%s3 + $0x90] sm:$0xff]
          %v577 = vld [vmem:[%s3 + $0x98] sm:$0xff]
          %v578 = vld [vmem:[%s3 + $0xa0] sm:$0xff]
          %v579 = vld [vmem:[%s3 + $0xa8] sm:$0xff]
          %v580 = vld [vmem:[%s3 + $0xb0] sm:$0xff]
          %v581 = vld [vmem:[%s3 + $0xb8] sm:$0xff]
          %v582 = vld [vmem:[%s3 + $0xc0] sm:$0xff]
          %v583 = vld [vmem:[%s3 + $0xc8] sm:$0xff]
          %v584 = vld [vmem:[%s3 + $0xd0] sm:$0xff]
          %v585 = vld [vmem:[%s3 + $0xd8] sm:$0xff]
          %v586 = vld [vmem:[%s3 + $0xe0] sm:$0xff]
          %v587 = vld [vmem:[%s3 + $0xe8] sm:$0xff]
          %v588 = vld [vmem:[%s3 + $0xf0] sm:$0xff]
          %v589 = vld [vmem:[%s3 + $0xf8] sm:$0xff]
          %v590 = vld [vmem:[%s4] sm:$0x1]
          %v592 = vlaneseq
          %v593 = vshrl.u32 %v592, 7
          %v594 = vsub.s32 0, %v593
          %v595 = vrot.slane %v590, %v594
          %597 = vmatprep.subr.mxu0 0.0
          %598 = vmatpush1.msra.mxu0 %v558
          %599 = vmatprep.subr.mxu0 0.0
          %600 = vmatpush1.msra.mxu0 %v559
          %601 = vmatprep.subr.mxu0 0.0
          %602 = vmatpush1.msra.mxu0 %v560
          %603 = vmatprep.subr.mxu0 0.0
          %604 = vmatpush1.msra.mxu0 %v561
          %605 = vmatprep.subr.mxu0 0.0
          %606 = vmatpush1.msra.mxu0 %v562
          %607 = vmatprep.subr.mxu0 0.0
          %608 = vmatpush1.msra.mxu0 %v563
          %609 = vmatprep.subr.mxu0 0.0
          %610 = vmatpush1.msra.mxu0 %v564
          %611 = vmatprep.subr.mxu0 0.0
          %612 = vmatpush1.msra.mxu0 %v565
          %613 = vmatprep.subr.mxu0 0.0
          %614 = vmatpush1.msra.mxu0 %v566
          %615 = vmatprep.subr.mxu0 0.0
          %616 = vmatpush1.msra.mxu0 %v567
          %617 = vmatprep.subr.mxu0 0.0
          %618 = vmatpush1.msra.mxu0 %v568
          %619 = vmatprep.subr.mxu0 0.0
          %620 = vmatpush1.msra.mxu0 %v569
          %621 = vmatprep.subr.mxu0 0.0
          %622 = vmatpush1.msra.mxu0 %v570
          %623 = vmatprep.subr.mxu0 0.0
          %624 = vmatpush1.msra.mxu0 %v571
          %625 = vmatprep.subr.mxu0 0.0
          %626 = vmatpush1.msra.mxu0 %v572
          %627 = vmatprep.subr.mxu0 0.0
          %628 = vmatpush1.msra.mxu0 %v573
          %629 = vmatprep.subr.mxu0 0.0
          %630 = vmatpush1.msra.mxu0 %v574
          %631 = vmatprep.subr.mxu0 0.0
          %632 = vmatpush1.msra.mxu0 %v575
          %633 = vmatprep.subr.mxu0 0.0
          %634 = vmatpush1.msra.mxu0 %v576
          %635 = vmatprep.subr.mxu0 0.0
          %636 = vmatpush1.msra.mxu0 %v577
          %637 = vmatprep.subr.mxu0 0.0
          %638 = vmatpush1.msra.mxu0 %v578
          %639 = vmatprep.subr.mxu0 0.0
          %640 = vmatpush1.msra.mxu0 %v579
          %641 = vmatprep.subr.mxu0 0.0
          %642 = vmatpush1.msra.mxu0 %v580
          %643 = vmatprep.subr.mxu0 0.0
          %644 = vmatpush1.msra.mxu0 %v581
          %645 = vmatprep.subr.mxu0 0.0
          %646 = vmatpush1.msra.mxu0 %v582
          %647 = vmatprep.subr.mxu0 0.0
          %648 = vmatpush1.msra.mxu0 %v583
          %649 = vmatprep.subr.mxu0 0.0
          %650 = vmatpush1.msra.mxu0 %v584
          %651 = vmatprep.subr.mxu0 0.0
          %652 = vmatpush1.msra.mxu0 %v585
          %653 = vmatprep.subr.mxu0 0.0
          %654 = vmatpush1.msra.mxu0 %v586
          %655 = vmatprep.subr.mxu0 0.0
          %656 = vmatpush1.msra.mxu0 %v587
          %657 = vmatprep.subr.mxu0 0.0
          %658 = vmatpush1.msra.mxu0 %v588
          %659 = vmatprep.subr.mxu0 0.0
          %660 = vmatpush1.msra.mxu0 %v589
          %661 = vmatprep.mubr.f32.mxu0 %v550
          %662 = vmatmul.mubr.f32.gmra.mrb[0].mxu0 %v534
          %v663 = vpop.f32.mrb[0].mxu0
          %v664 = vadd.f32 %v595, %v663
          %v665 = vpop.f32.mrb[0].mxu0
          %666 = vmatprep.mubr.f32.mxu0 %v551
          %667 = vmatmul.mubr.f32.gmra.mrb[0].mxu0 %v535
          %v668 = vpop.f32.mrb[0].mxu0
          %v669 = vadd.f32 %v595, %v668
          %v670 = vpop.f32.mrb[0].mxu0
          %671 = vmatprep.mubr.f32.mxu0 %v552
          %672 = vmatmul.mubr.f32.gmra.mrb[0].mxu0 %v536
          %v673 = vpop.f32.mrb[0].mxu0
          %v674 = vadd.f32 %v595, %v673
          %v675 = vpop.f32.mrb[0].mxu0
          %676 = vmatprep.mubr.f32.mxu0 %v553
          %677 = vmatmul.mubr.f32.gmra.mrb[0].mxu0 %v537
          %v678 = vpop.f32.mrb[0].mxu0
          %v679 = vadd.f32 %v595, %v678
          %v680 = vpop.f32.mrb[0].mxu0
          %681 = vmatprep.mubr.f32.mxu0 %v554
          %682 = vmatmul.mubr.f32.gmra.mrb[0].mxu0 %v538
          %v683 = vpop.f32.mrb[0].mxu0
          %v684 = vadd.f32 %v595, %v683
          %v685 = vpop.f32.mrb[0].mxu0
          %686 = vmatprep.mubr.f32.mxu0 %v555
          %687 = vmatmul.mubr.f32.gmra.mrb[0].mxu0 %v539
          %v688 = vpop.f32.mrb[0].mxu0
          %v689 = vadd.f32 %v595, %v688
          %v690 = vpop.f32.mrb[0].mxu0
          %691 = vmatprep.mubr.f32.mxu0 %v556
          %692 = vmatmul.mubr.f32.gmra.mrb[0].mxu0 %v540
          %v693 = vpop.f32.mrb[0].mxu0
          %v694 = vadd.f32 %v595, %v693
          %v695 = vpop.f32.mrb[0].mxu0
          %696 = vmatprep.mubr.f32.mxu0 %v557
          %697 = vmatmul.mubr.f32.gmra.mrb[0].mxu0 %v541
          %v698 = vpop.f32.mrb[0].mxu0
          %v699 = vadd.f32 %v595, %v698
          %v700 = vpop.f32.mrb[0].mxu0
          %701 = vdwg.mxu0
          %702 = vst [vmem:[%s355] sm:$0xff] %v664
          %703 = vst [vmem:[%s355 + $0x8] sm:$0xff] %v669
          %704 = vst [vmem:[%s355 + $0x10] sm:$0xff] %v674
          %705 = vst [vmem:[%s355 + $0x18] sm:$0xff] %v679
          %706 = vst [vmem:[%s355 + $0x20] sm:$0xff] %v684
          %707 = vst [vmem:[%s355 + $0x28] sm:$0xff] %v689
          %708 = vst [vmem:[%s355 + $0x30] sm:$0xff] %v694
          %709 = vst [vmem:[%s355 + $0x38] sm:$0xff] %v699
        $region89: #{_lambda_.2} parent=76 // pred_fallthru
          _
        %s710 = smul.u32 8, %s20
        %p711 = scmp.lt.s32.totalorder %s710, 31
        %s712 = scalar_select %p711, %s710, 31
        %s713 = smul.addr %s712, 8
        %s714 = scalar_lea.vmem %s5, %s713
        // Predicated region
        $region90: #{_lambda_.2} parent=76 // pred_check
          %p715 = pneg %p168
        $region91: #{_lambda_.2} parent=76 // pred_check_branch
          %717 = sbr.rel (%p715) target = $region93
        $region92: #{_lambda_.2} parent=76 // pred_region
          %s718 = smul.u32 8, %s20
        $region93: #{_lambda_.2} parent=76 // pred_fallthru
          _
      $region77: #{_lambda_.2} parent=5 // pred_fallthru
        _
      %p719 = scmp.le.s32.totalorder 2, %s11
      // Predicated region
      $region94: #{_lambda_.2} parent=5 // pred_check
        %p720 = pneg %p719
      $region95: #{_lambda_.2} parent=5 // pred_check_branch
        %722 = sbr.rel (%p720) target = $region97
      $region96: #{_lambda_.2} parent=5 // pred_region
        %s723 = ssub.s32 %s11, 2
        // Predicated region
        $region98: #{_lambda_.2} parent=96 // pred_check
          %p724 = pneg %p174
        $region99: #{_lambda_.2} parent=96 // pred_check_branch
          %726 = sbr.rel (%p724) target = $region101
        $region100: #{_lambda_.2} parent=96 // pred_region
          %s727 = smul.u32 8, %s22
          %p728 = scmp.lt.s32.totalorder %s727, 31
          %s729 = scalar_select %p728, %s727, 31
          %s730 = smul.addr %s729, 8
          %s731 = scalar_lea.vmem %s5, %s730
        $region101: #{_lambda_.2} parent=96 // pred_fallthru
          _
      $region97: #{_lambda_.2} parent=5 // pred_fallthru
        _
    $region6: #{_lambda_.2} parent=1 // loop_footer
      %s15 = sadd.s32 1, %s11
    $region7: #{_lambda_.2} parent=1 // loop_footer_branch
      %10 = sbr.rel target = $region3
    $region8: #{_lambda_.2} parent=1 // loop_exit
      _

</llo_original>
